<compile_context>
chip_gen: v7x
topology: tpu7x:2x2x1
jax: 0.10.0
libtpu: 0.0.40
codegen_flags: <defaults>
</compile_context>

<pallas_src>
import functools

import jax
import jax.numpy as jnp
from jax import lax
from jax.experimental import pallas as pl
from jax.experimental.pallas import tpu as pltpu


# tap order t = (dy+1)*3 + (dx+1), matching the flattened torch (3,3) kernel
_TAPS = tuple((dy, dx) for dy in (-1, 0, 1) for dx in (-1, 0, 1))


# ----------------------------- in-kernel helpers -----------------------------

def _ln_channels(x, w, b, eps=1e-5):
    """LayerNorm over the channel (sublane) axis of a (C, HW) slab (biased var)."""
    mu = jnp.mean(x, axis=0, keepdims=True)
    var = jnp.mean((x - mu) ** 2, axis=0, keepdims=True)
    return (x - mu) * lax.rsqrt(var + eps) * w + b


def _erf(x):
    # Abramowitz & Stegun 7.1.26 (abs err ~1.5e-7 ~ f32 eps): keeps torch
    # nn.GELU(approximate='none') semantics; the exp goes to the EUP slot.
    a1, a2, a3, a4, a5 = 0.254829592, -0.284496736, 1.421413741, -1.453152027, 1.061405429
    pc = 0.3275911
    s = jnp.where(x >= 0.0, 1.0, -1.0)
    ax = jnp.abs(x)
    t = 1.0 / (1.0 + pc * ax)
    y = 1.0 - (((((a5 * t + a4) * t) + a3) * t + a2) * t + a1) * t * jnp.exp(-ax * ax)
    return s * y


def _gelu(x):
    return 0.5 * x * (1.0 + _erf(x * 0.7071067811865476))


# --------------------------------- the kernel --------------------------------

def _dcab_kernel(img_ref, flw_ref, wmm_ref, wf_ref, m9_ref, out_ref, state_ref, *, W):
    f32 = jnp.float32
    l = pl.program_id(1)                                 # layer index (grid axis 1)

    # layer 0: seed the resident running activation with the image branch
    @pl.when(l == 0)
    def _():
        state_ref[...] = img_ref[0].astype(f32)

    x = state_ref[...]                                   # (C, HW) running activation
    flw = flw_ref[0].astype(f32)                         # (C, HW) flow branch (fixed)
    C, HW = x.shape

    wmm = wmm_ref[0]                                     # (3C, 6C) matmul weight slab
    wf = wf_ref[0]                                       # (3C, 19+C) f32 param slab
    m9 = m9_ref[...]                                     # (9, HW) boundary masks
    mm = wmm.dtype

    # static unpack of the consolidated weight slabs
    wqkv  = wmm[:, 0:2 * C]                              # (3C, 2C) block-diag q|k|v 1x1
    wproj = wmm[0:C, 2 * C:3 * C]                        # (C, C)  project_out
    wfc1  = wmm[0:2 * C, 3 * C:4 * C]                    # (2C, C) Mlp.fc1
    wfc2  = wmm[0:C, 4 * C:6 * C]                        # (C, 2C) Mlp.fc2

    dww            = wf[:, 0:10]                         # (3C, 10): 9 dw taps + bias
    ln1i_w, ln1i_b = wf[0:C, 10:11], wf[0:C, 11:12]
    ln1f_w, ln1f_b = wf[0:C, 12:13], wf[0:C, 13:14]
    temp_row       = wf[0:C, 14:15]                      # temperature[head(row)]
    ln2_w, ln2_b   = wf[0:C, 15:16], wf[0:C, 16:17]
    fc2_b          = wf[0:C, 17:18]
    head_bias      = wf[0:C, 18:18 + C]                  # (C, C) block-diag head mask
    fc1_b          = wf[0:2 * C, 18 + C:19 + C]

    # ---- custom WithBias LayerNorm over channels ----
    x_n = _ln_channels(x, ln1i_w, ln1i_b)
    y_n = _ln_channels(flw, ln1f_w, ln1f_b)

    # ---- fused q|k|v 1x1 convs: one block-diagonal MXU dot ----
    xy_n = jnp.concatenate([x_n, y_n], axis=0)                          # (2C, HW)
    qkv = jnp.dot(wqkv, xy_n.astype(mm), preferred_element_type=f32)    # (3C, HW)

    # ---- fused depthwise 3x3 on the q|k|v slab (centre tap seeds acc) ----
    acc = qkv * dww[:, 4:5] + dww[:, 9:10]               # centre tap mask is all-ones
    for t, (dy, dx) in enumerate(_TAPS):
        if t == 4:
            continue
        s = dy * W + dx
        rolled = pltpu.roll(qkv, (-s) % HW, axis=1)
        acc = acc + rolled * m9[t:t + 1, :] * dww[:, t:t + 1]
    q, k, v = acc[0:C, :], acc[C:2 * C, :], acc[2 * C:3 * C, :]

    # ---- batched multi-head channel attention (block-diagonal via head_bias) ----
    # F.normalize(..., dim=-1) == L2-normalize over the spatial (HW/lane) axis.
    q_n = q * lax.rsqrt(jnp.maximum(jnp.sum(q * q, axis=1, keepdims=True), 1e-24))
    k_n = k * lax.rsqrt(jnp.maximum(jnp.sum(k * k, axis=1, keepdims=True), 1e-24))
    attn = lax.dot_general(q_n, k_n, (((1,), (1,)), ((), ())),
                           preferred_element_type=f32)                  # (C, C)
    attn = attn * temp_row + head_bias
    attn = attn - jnp.max(attn, axis=-1, keepdims=True)
    e = jnp.exp(attn)
    p = e * pl.reciprocal(jnp.sum(e, axis=-1, keepdims=True), approx=True)
    att = jnp.dot(p, v, preferred_element_type=f32)                     # (C, HW)
    fused = x + jnp.dot(wproj, att.astype(mm), preferred_element_type=f32)

    # ---- FFN branch: nn.LayerNorm + Mlp(fc1 -> GELU -> fc2), dropout = 0 ----
    fn = _ln_channels(fused, ln2_w, ln2_b)
    h1 = _gelu(jnp.dot(wfc1, fn.astype(mm), preferred_element_type=f32) + fc1_b)
    h2 = jnp.dot(wfc2, h1.astype(mm), preferred_element_type=f32) + fc2_b
    new_x = fused + h2

    state_ref[...] = new_x                               # carry to layer l+1 (VMEM)
    out_ref[0] = new_x.astype(out_ref.dtype)             # flushed to HBM once per b


# --------------------------------- host packing --------------------------------

def _make_tap_masks(H, W):
    """(9, H*W) {0,1} validity masks for a 3x3 'same' conv, shared by q/k/v & layers."""
    h = jnp.arange(H)[:, None]
    w = jnp.arange(W)[None, :]
    rows = []
    for dy, dx in _TAPS:
        valid = (h + dy >= 0) & (h + dy < H) & (w + dx >= 0) & (w + dx < W)
        rows.append(valid.reshape(-1))
    return jnp.stack(rows).astype(jnp.float32)


def pack_layer_params(p, C, heads, matmul_dtype=jnp.bfloat16):
    """Pack one layer's 21 torch-style tensors into 2 lane-dense slabs.

    Returns (w_mm (3C, 6C) matmul_dtype, w_f32 (3C, 19+C) float32).
    Matmul weights go in `matmul_dtype` (bf16 -> MXU-friendly operands, f32
    accumulation in-kernel; pass jnp.float32 for strict parity).  Everything
    touched by VPU/EUP math stays f32.
    """
    cp = C // heads
    f32 = jnp.float32
    z = lambda r, c: jnp.zeros((r, c), f32)

    # matmul slab: [ [[wq,0],[0,wk],[0,wv]] | wproj | fc1_w | fc2_w ] (rows padded to 3C)
    wqkv = jnp.concatenate([
        jnp.concatenate([p["wq"], z(C, C)], axis=1),
        jnp.concatenate([z(C, C), p["wk"]], axis=1),
        jnp.concatenate([z(C, C), p["wv"]], axis=1)], axis=0)            # (3C, 2C)
    wproj = jnp.concatenate([p["wproj"], z(2 * C, C)], axis=0)           # (3C, C)
    wfc1 = jnp.concatenate([p["fc1_w"], z(C, C)], axis=0)                # (3C, C)
    wfc2 = jnp.concatenate([p["fc2_w"], z(2 * C, 2 * C)], axis=0)        # (3C, 2C)
    w_mm = jnp.concatenate([wqkv, wproj, wfc1, wfc2], axis=1).astype(matmul_dtype)

    # f32 slab: [ dw taps+bias | 8 per-channel vectors | head_bias | fc1_b ]
    dww = jnp.concatenate([
        jnp.concatenate([p["dq_w"], p["dq_b"]], axis=1),
        jnp.concatenate([p["dk_w"], p["dk_b"]], axis=1),
        jnp.concatenate([p["dv_w"], p["dv_b"]], axis=1)], axis=0)        # (3C, 10)
    head_id = jnp.repeat(jnp.arange(heads), cp)
    head_bias = jnp.where(head_id[:, None] == head_id[None, :], 0.0, -1e30).astype(f32)
    temp_row = jnp.repeat(p["temp"].reshape(heads), cp).reshape(C, 1)
    vecs = jnp.concatenate([p["ln1i_w"], p["ln1i_b"], p["ln1f_w"], p["ln1f_b"],
                            temp_row, p["ln2_w"], p["ln2_b"], p["fc2_b"],
                            head_bias], axis=1)                          # (C, 8+C)
    vecs = jnp.concatenate([vecs, z(2 * C, 8 + C)], axis=0)              # (3C, 8+C)
    fc1b = jnp.concatenate([p["fc1_b"], z(C, 1)], axis=0)                # (3C, 1)
    w_f32 = jnp.concatenate([dww, vecs, fc1b], axis=1).astype(f32)       # (3C, 19+C)
    return w_mm, w_f32


def pack_all_layers(layer_params, C, heads, matmul_dtype=jnp.bfloat16):
    packed = [pack_layer_params(p, C, heads, matmul_dtype) for p in layer_params]
    w_mm = jnp.stack([m for m, _ in packed], axis=0)     # (L, 3C, 6C)
    w_f32 = jnp.stack([f for _, f in packed], axis=0)    # (L, 3C, 19+C)
    return w_mm, w_f32


# --------------------------------- wrapper -------------------------------------

@functools.partial(jax.jit, static_argnames=("H", "W"))
def multilayer_dcab(x_nchw, y_nchw, w_mm, w_f32, *, H, W):
    """x, y: NCHW (like PyTorch). Returns NCHW.  x = layer(x, y) per layer, y fixed."""
    B, C = x_nchw.shape[:2]
    L = w_mm.shape[0]
    HW = H * W
    x3 = x_nchw.reshape(B, C, HW)        # channels-first slab: free reshape
    y3 = y_nchw.reshape(B, C, HW)
    mask9 = _make_tap_masks(H, W)        # built once, shared by all layers / batch / q,k,v

    batch_spec = pl.BlockSpec((1, C, HW), lambda b, l: (b, 0, 0))          # resident over L
    mm_spec = pl.BlockSpec((1,) + tuple(w_mm.shape[1:]), lambda b, l: (l, 0, 0))
    f32_spec = pl.BlockSpec((1,) + tuple(w_f32.shape[1:]), lambda b, l: (l, 0, 0))
    mask_spec = pl.BlockSpec(tuple(mask9.shape), lambda b, l: (0, 0))

    out = pl.pallas_call(
        functools.partial(_dcab_kernel, W=W),
        out_shape=jax.ShapeDtypeStruct((B, C, HW), x3.dtype),
        grid=(B, L),                                    # L innermost: layer carry per b
        in_specs=[batch_spec, batch_spec, mm_spec, f32_spec, mask_spec],
        out_specs=batch_spec,
        scratch_shapes=[pltpu.VMEM((C, HW), jnp.float32)],   # running activation carry
        compiler_params=pltpu.CompilerParams(
            dimension_semantics=("parallel", "arbitrary"),   # batch across v7x TCs
            vmem_limit_bytes=32 * 1024 * 1024),
    )(x3, y3, w_mm, w_f32, mask9)
    return out.reshape(B, C, H, W)


# --------------------------- deterministic parameters -------------------------

def init_layer_params(key, C, heads):
    hidden = 2 * C                              # ffn_expansion_factor = 2
    ks = jax.random.split(key, 9)

    def rnd(k, shape, scale):
        return (scale * jax.random.normal(k, shape)).astype(jnp.float32)

    ones = lambda s: jnp.ones(s, jnp.float32)
    zeros = lambda s: jnp.zeros(s, jnp.float32)
    return {
        # custom WithBias LayerNorms (torch init: ones / zeros), stored (C, 1)
        "ln1i_w": ones((C, 1)), "ln1i_b": zeros((C, 1)),
        "ln1f_w": ones((C, 1)), "ln1f_b": zeros((C, 1)),
        # 1x1 convs (bias=False), torch layout (C_out, C_in)
        "wq": rnd(ks[0], (C, C), 0.3),
        "wk": rnd(ks[1], (C, C), 0.3),
        "wv": rnd(ks[2], (C, C), 0.3),
        # depthwise 3x3 convs (groups=C, bias=True), taps stored (C, 9)
        "dq_w": rnd(ks[3], (C, 9), 0.2), "dq_b": zeros((C, 1)),
        "dk_w": rnd(ks[4], (C, 9), 0.2), "dk_b": zeros((C, 1)),
        "dv_w": rnd(ks[5], (C, 9), 0.2), "dv_b": zeros((C, 1)),
        # attention temperature (torch init: ones), project_out 1x1 (bias=False)
        "temp": ones((heads, 1)),
        "wproj": rnd(ks[6], (C, C), 0.3),
        # nn.LayerNorm
        "ln2_w": ones((C, 1)), "ln2_b": zeros((C, 1)),
        # Mlp: fc1 (C->2C), fc2 (2C->C), torch layout (out, in); biases zero
        "fc1_w": rnd(ks[7], (hidden, C), 0.3), "fc1_b": zeros((hidden, 1)),
        "fc2_w": rnd(ks[8], (C, hidden), 0.3), "fc2_b": zeros((C, 1)),
    }


# ------------------------------------ main ------------------------------------

if __name__ == "__main__":
    dim, num_heads, num_layers = 8, 2, 2
    B, H, W = 2, 16, 16

    kx, ky = jax.random.split(jax.random.PRNGKey(0))
    x = jax.random.normal(kx, (B, dim, H, W), jnp.float32)   # image (NCHW)
    y = jax.random.normal(ky, (B, dim, H, W), jnp.float32)   # flow  (NCHW)

    layer_keys = jax.random.split(jax.random.PRNGKey(42), num_layers)
    layer_params = [init_layer_params(k, dim, num_heads) for k in layer_keys]
    w_mm, w_f32 = pack_all_layers(layer_params, dim, num_heads)

    out = multilayer_dcab(x, y, w_mm, w_f32, H=H, W=W)
    out = jax.block_until_ready(out)
    assert out.shape == (B, dim, H, W) and out.dtype == jnp.float32
    assert bool(jnp.all(jnp.isfinite(out)))
    print("KERNEL_OK")
</pallas_src>

<mosaic_0001>
module attributes {stable_mosaic.version = 11 : i64} {
  func.func @_dcab_kernel(%arg0: i32, %arg1: i32, %arg2: memref<1x8x256xf32, #tpu.memory_space<vmem>>, %arg3: memref<1x8x256xf32, #tpu.memory_space<vmem>>, %arg4: memref<1x24x48xbf16, #tpu.memory_space<vmem>>, %arg5: memref<1x24x27xf32, #tpu.memory_space<vmem>>, %arg6: memref<9x256xf32, #tpu.memory_space<vmem>>, %arg7: memref<1x8x256xf32, #tpu.memory_space<vmem>>, %arg8: memref<8x256xf32, #tpu.memory_space<vmem>>) attributes {dimension_semantics = [#tpu.dimension_semantics<parallel>, #tpu.dimension_semantics<arbitrary>], iteration_bounds = array<i64: 2, 2>, scalar_prefetch = 0 : i64, scratch_operands = 1 : i64, tpu.core_type = #tpu.core_type<tc>, window_params = [{transform_indices = @transform_0, window_bounds = array<i64: 1, 8, 256>}, {transform_indices = @transform_1, window_bounds = array<i64: 1, 8, 256>}, {transform_indices = @transform_2, window_bounds = array<i64: 1, 24, 48>}, {transform_indices = @transform_3, window_bounds = array<i64: 1, 24, 27>}, {pipeline_mode = #tpu.pipeline_mode<synchronous>, transform_indices = @transform_4, window_bounds = array<i64: 9, 256>}, {transform_indices = @transform_5, window_bounds = array<i64: 1, 8, 256>}]} {
    %c0_i32 = arith.constant 0 : i32
    %0 = arith.cmpi eq, %arg1, %c0_i32 : i32
    %1 = arith.extui %0 : i1 to i32
    %c0_i32_0 = arith.constant 0 : i32
    %2 = arith.cmpi ne, %1, %c0_i32_0 : i32
    scf.if %2 {
      %c0_60 = arith.constant 0 : index
      %c0_61 = arith.constant 0 : index
      %c0_62 = arith.constant 0 : index
      %256 = vector.load %arg2[%c0_60, %c0_61, %c0_62] : memref<1x8x256xf32, #tpu.memory_space<vmem>>, vector<1x8x256xf32>
      %257 = vector.shape_cast %256 : vector<1x8x256xf32> to vector<8x256xf32>
      %c0_63 = arith.constant 0 : index
      %c0_64 = arith.constant 0 : index
      %258 = vector.load %arg8[%c0_63, %c0_64] : memref<8x256xf32, #tpu.memory_space<vmem>>, vector<8x256xf32>
      tpu.vector_store %arg8[%c0_63, %c0_64], %257 {strides = array<i32>} : memref<8x256xf32, #tpu.memory_space<vmem>>, vector<8x256xf32>,
    } else {
    }
    %c0 = arith.constant 0 : index
    %c0_1 = arith.constant 0 : index
    %3 = vector.load %arg8[%c0, %c0_1] : memref<8x256xf32, #tpu.memory_space<vmem>>, vector<8x256xf32>
    %c0_2 = arith.constant 0 : index
    %c0_3 = arith.constant 0 : index
    %c0_4 = arith.constant 0 : index
    %4 = vector.load %arg3[%c0_2, %c0_3, %c0_4] : memref<1x8x256xf32, #tpu.memory_space<vmem>>, vector<1x8x256xf32>
    %5 = vector.shape_cast %4 : vector<1x8x256xf32> to vector<8x256xf32>
    %c0_5 = arith.constant 0 : index
    %c0_6 = arith.constant 0 : index
    %c0_7 = arith.constant 0 : index
    %6 = vector.load %arg4[%c0_5, %c0_6, %c0_7] : memref<1x24x48xbf16, #tpu.memory_space<vmem>>, vector<1x24x48xbf16>
    %7 = vector.shape_cast %6 : vector<1x24x48xbf16> to vector<24x48xbf16>
    %c0_8 = arith.constant 0 : index
    %c0_9 = arith.constant 0 : index
    %c0_10 = arith.constant 0 : index
    %8 = vector.load %arg5[%c0_8, %c0_9, %c0_10] : memref<1x24x27xf32, #tpu.memory_space<vmem>>, vector<1x24x27xf32>
    %9 = vector.shape_cast %8 : vector<1x24x27xf32> to vector<24x27xf32>
    %c0_11 = arith.constant 0 : index
    %c0_12 = arith.constant 0 : index
    %10 = vector.load %arg6[%c0_11, %c0_12] : memref<9x256xf32, #tpu.memory_space<vmem>>, vector<9x256xf32>
    %11 = vector.extract_strided_slice %7 {offsets = [0, 0], sizes = [24, 16], strides = [1, 1]} : vector<24x48xbf16> to vector<24x16xbf16>
    %12 = vector.extract_strided_slice %7 {offsets = [0, 16], sizes = [8, 8], strides = [1, 1]} : vector<24x48xbf16> to vector<8x8xbf16>
    %13 = vector.extract_strided_slice %7 {offsets = [0, 24], sizes = [16, 8], strides = [1, 1]} : vector<24x48xbf16> to vector<16x8xbf16>
    %14 = vector.extract_strided_slice %7 {offsets = [0, 32], sizes = [8, 16], strides = [1, 1]} : vector<24x48xbf16> to vector<8x16xbf16>
    %15 = vector.extract_strided_slice %9 {offsets = [0, 0], sizes = [24, 10], strides = [1, 1]} : vector<24x27xf32> to vector<24x10xf32>
    %16 = vector.extract_strided_slice %9 {offsets = [0, 10], sizes = [8, 1], strides = [1, 1]} : vector<24x27xf32> to vector<8x1xf32>
    %17 = vector.extract_strided_slice %9 {offsets = [0, 11], sizes = [8, 1], strides = [1, 1]} : vector<24x27xf32> to vector<8x1xf32>
    %18 = vector.extract_strided_slice %9 {offsets = [0, 12], sizes = [8, 1], strides = [1, 1]} : vector<24x27xf32> to vector<8x1xf32>
    %19 = vector.extract_strided_slice %9 {offsets = [0, 13], sizes = [8, 1], strides = [1, 1]} : vector<24x27xf32> to vector<8x1xf32>
    %20 = vector.extract_strided_slice %9 {offsets = [0, 14], sizes = [8, 1], strides = [1, 1]} : vector<24x27xf32> to vector<8x1xf32>
    %21 = vector.extract_strided_slice %9 {offsets = [0, 15], sizes = [8, 1], strides = [1, 1]} : vector<24x27xf32> to vector<8x1xf32>
    %22 = vector.extract_strided_slice %9 {offsets = [0, 16], sizes = [8, 1], strides = [1, 1]} : vector<24x27xf32> to vector<8x1xf32>
    %23 = vector.extract_strided_slice %9 {offsets = [0, 17], sizes = [8, 1], strides = [1, 1]} : vector<24x27xf32> to vector<8x1xf32>
    %24 = vector.extract_strided_slice %9 {offsets = [0, 18], sizes = [8, 8], strides = [1, 1]} : vector<24x27xf32> to vector<8x8xf32>
    %25 = vector.extract_strided_slice %9 {offsets = [0, 26], sizes = [16, 1], strides = [1, 1]} : vector<24x27xf32> to vector<16x1xf32>
    %cst = arith.constant dense<0.000000e+00> : vector<256xf32>
    %26 = vector.multi_reduction <add>, %3, %cst [0] : vector<8x256xf32> to vector<256xf32>
    %27 = vector.shape_cast %26 : vector<256xf32> to vector<1x256xf32>
    %cst_13 = arith.constant 8.000000e+00 : f32
    %28 = vector.broadcast %cst_13 : f32 to vector<1x256xf32>
    %29 = arith.divf %27, %28 : vector<1x256xf32>
    %30 = vector.broadcast %29 : vector<1x256xf32> to vector<8x256xf32>
    %31 = arith.subf %3, %30 : vector<8x256xf32>
    %32 = arith.mulf %31, %31 : vector<8x256xf32>
    %cst_14 = arith.constant dense<0.000000e+00> : vector<256xf32>
    %33 = vector.multi_reduction <add>, %32, %cst_14 [0] : vector<8x256xf32> to vector<256xf32>
    %34 = vector.shape_cast %33 : vector<256xf32> to vector<1x256xf32>
    %cst_15 = arith.constant 8.000000e+00 : f32
    %35 = vector.broadcast %cst_15 : f32 to vector<1x256xf32>
    %36 = arith.divf %34, %35 : vector<1x256xf32>
    %37 = vector.broadcast %29 : vector<1x256xf32> to vector<8x256xf32>
    %38 = arith.subf %3, %37 : vector<8x256xf32>
    %cst_16 = arith.constant 9.99999974E-6 : f32
    %39 = vector.broadcast %cst_16 : f32 to vector<1x256xf32>
    %40 = arith.addf %36, %39 : vector<1x256xf32>
    %41 = math.rsqrt %40 : vector<1x256xf32>
    %42 = vector.broadcast %41 : vector<1x256xf32> to vector<8x256xf32>
    %43 = arith.mulf %38, %42 : vector<8x256xf32>
    %44 = vector.broadcast %16 : vector<8x1xf32> to vector<8x256xf32>
    %45 = arith.mulf %43, %44 : vector<8x256xf32>
    %46 = vector.broadcast %17 : vector<8x1xf32> to vector<8x256xf32>
    %47 = arith.addf %45, %46 : vector<8x256xf32>
    %cst_17 = arith.constant dense<0.000000e+00> : vector<256xf32>
    %48 = vector.multi_reduction <add>, %5, %cst_17 [0] : vector<8x256xf32> to vector<256xf32>
    %49 = vector.shape_cast %48 : vector<256xf32> to vector<1x256xf32>
    %cst_18 = arith.constant 8.000000e+00 : f32
    %50 = vector.broadcast %cst_18 : f32 to vector<1x256xf32>
    %51 = arith.divf %49, %50 : vector<1x256xf32>
    %52 = vector.broadcast %51 : vector<1x256xf32> to vector<8x256xf32>
    %53 = arith.subf %5, %52 : vector<8x256xf32>
    %54 = arith.mulf %53, %53 : vector<8x256xf32>
    %cst_19 = arith.constant dense<0.000000e+00> : vector<256xf32>
    %55 = vector.multi_reduction <add>, %54, %cst_19 [0] : vector<8x256xf32> to vector<256xf32>
    %56 = vector.shape_cast %55 : vector<256xf32> to vector<1x256xf32>
    %cst_20 = arith.constant 8.000000e+00 : f32
    %57 = vector.broadcast %cst_20 : f32 to vector<1x256xf32>
    %58 = arith.divf %56, %57 : vector<1x256xf32>
    %59 = vector.broadcast %51 : vector<1x256xf32> to vector<8x256xf32>
    %60 = arith.subf %5, %59 : vector<8x256xf32>
    %cst_21 = arith.constant 9.99999974E-6 : f32
    %61 = vector.broadcast %cst_21 : f32 to vector<1x256xf32>
    %62 = arith.addf %58, %61 : vector<1x256xf32>
    %63 = math.rsqrt %62 : vector<1x256xf32>
    %64 = vector.broadcast %63 : vector<1x256xf32> to vector<8x256xf32>
    %65 = arith.mulf %60, %64 : vector<8x256xf32>
    %66 = vector.broadcast %18 : vector<8x1xf32> to vector<8x256xf32>
    %67 = arith.mulf %65, %66 : vector<8x256xf32>
    %68 = vector.broadcast %19 : vector<8x1xf32> to vector<8x256xf32>
    %69 = arith.addf %67, %68 : vector<8x256xf32>
    %70 = tpu.concatenate %47, %69 in 0 : vector<8x256xf32>, vector<8x256xf32> -> vector<16x256xf32>
    %71 = arith.truncf %70 : vector<16x256xf32> to vector<16x256xbf16>
    %cst_22 = arith.constant dense<0.000000e+00> : vector<24x256xf32>
    %72 = tpu.matmul %11, %71, %cst_22 {dimension_numbers = #tpu.dot_dimension_numbers<[1], [0], [0], [1], [0, 0, 1, 1], [], []>} : vector<24x16xbf16>, vector<16x256xbf16>, vector<24x256xf32> -> vector<24x256xf32>
    %73 = vector.extract_strided_slice %15 {offsets = [0, 4], sizes = [24, 1], strides = [1, 1]} : vector<24x10xf32> to vector<24x1xf32>
    %74 = vector.broadcast %73 : vector<24x1xf32> to vector<24x256xf32>
    %75 = arith.mulf %72, %74 : vector<24x256xf32>
    %76 = vector.extract_strided_slice %15 {offsets = [0, 9], sizes = [24, 1], strides = [1, 1]} : vector<24x10xf32> to vector<24x1xf32>
    %77 = vector.broadcast %76 : vector<24x1xf32> to vector<24x256xf32>
    %78 = arith.addf %75, %77 : vector<24x256xf32>
    %c17_i32 = arith.constant 17 : i32
    %79 = tpu.dynamic_rotate %72 by %c17_i32 dim 1 : vector<24x256xf32>, i32 -> vector<24x256xf32>
    %80 = vector.extract_strided_slice %10 {offsets = [0, 0], sizes = [1, 256], strides = [1, 1]} : vector<9x256xf32> to vector<1x256xf32>
    %81 = vector.broadcast %80 : vector<1x256xf32> to vector<24x256xf32>
    %82 = arith.mulf %79, %81 : vector<24x256xf32>
    %83 = vector.extract_strided_slice %15 {offsets = [0, 0], sizes = [24, 1], strides = [1, 1]} : vector<24x10xf32> to vector<24x1xf32>
    %84 = vector.broadcast %83 : vector<24x1xf32> to vector<24x256xf32>
    %85 = arith.mulf %82, %84 : vector<24x256xf32>
    %86 = arith.addf %78, %85 : vector<24x256xf32>
    %c16_i32 = arith.constant 16 : i32
    %87 = tpu.dynamic_rotate %72 by %c16_i32 dim 1 : vector<24x256xf32>, i32 -> vector<24x256xf32>
    %88 = vector.extract_strided_slice %10 {offsets = [1, 0], sizes = [1, 256], strides = [1, 1]} : vector<9x256xf32> to vector<1x256xf32>
    %89 = vector.broadcast %88 : vector<1x256xf32> to vector<24x256xf32>
    %90 = arith.mulf %87, %89 : vector<24x256xf32>
    %91 = vector.extract_strided_slice %15 {offsets = [0, 1], sizes = [24, 1], strides = [1, 1]} : vector<24x10xf32> to vector<24x1xf32>
    %92 = vector.broadcast %91 : vector<24x1xf32> to vector<24x256xf32>
    %93 = arith.mulf %90, %92 : vector<24x256xf32>
    %94 = arith.addf %86, %93 : vector<24x256xf32>
    %c15_i32 = arith.constant 15 : i32
    %95 = tpu.dynamic_rotate %72 by %c15_i32 dim 1 : vector<24x256xf32>, i32 -> vector<24x256xf32>
    %96 = vector.extract_strided_slice %10 {offsets = [2, 0], sizes = [1, 256], strides = [1, 1]} : vector<9x256xf32> to vector<1x256xf32>
    %97 = vector.broadcast %96 : vector<1x256xf32> to vector<24x256xf32>
    %98 = arith.mulf %95, %97 : vector<24x256xf32>
    %99 = vector.extract_strided_slice %15 {offsets = [0, 2], sizes = [24, 1], strides = [1, 1]} : vector<24x10xf32> to vector<24x1xf32>
    %100 = vector.broadcast %99 : vector<24x1xf32> to vector<24x256xf32>
    %101 = arith.mulf %98, %100 : vector<24x256xf32>
    %102 = arith.addf %94, %101 : vector<24x256xf32>
    %c1_i32 = arith.constant 1 : i32
    %103 = tpu.dynamic_rotate %72 by %c1_i32 dim 1 : vector<24x256xf32>, i32 -> vector<24x256xf32>
    %104 = vector.extract_strided_slice %10 {offsets = [3, 0], sizes = [1, 256], strides = [1, 1]} : vector<9x256xf32> to vector<1x256xf32>
    %105 = vector.broadcast %104 : vector<1x256xf32> to vector<24x256xf32>
    %106 = arith.mulf %103, %105 : vector<24x256xf32>
    %107 = vector.extract_strided_slice %15 {offsets = [0, 3], sizes = [24, 1], strides = [1, 1]} : vector<24x10xf32> to vector<24x1xf32>
    %108 = vector.broadcast %107 : vector<24x1xf32> to vector<24x256xf32>
    %109 = arith.mulf %106, %108 : vector<24x256xf32>
    %110 = arith.addf %102, %109 : vector<24x256xf32>
    %c255_i32 = arith.constant 255 : i32
    %111 = tpu.dynamic_rotate %72 by %c255_i32 dim 1 : vector<24x256xf32>, i32 -> vector<24x256xf32>
    %112 = vector.extract_strided_slice %10 {offsets = [5, 0], sizes = [1, 256], strides = [1, 1]} : vector<9x256xf32> to vector<1x256xf32>
    %113 = vector.broadcast %112 : vector<1x256xf32> to vector<24x256xf32>
    %114 = arith.mulf %111, %113 : vector<24x256xf32>
    %115 = vector.extract_strided_slice %15 {offsets = [0, 5], sizes = [24, 1], strides = [1, 1]} : vector<24x10xf32> to vector<24x1xf32>
    %116 = vector.broadcast %115 : vector<24x1xf32> to vector<24x256xf32>
    %117 = arith.mulf %114, %116 : vector<24x256xf32>
    %118 = arith.addf %110, %117 : vector<24x256xf32>
    %c241_i32 = arith.constant 241 : i32
    %119 = tpu.dynamic_rotate %72 by %c241_i32 dim 1 : vector<24x256xf32>, i32 -> vector<24x256xf32>
    %120 = vector.extract_strided_slice %10 {offsets = [6, 0], sizes = [1, 256], strides = [1, 1]} : vector<9x256xf32> to vector<1x256xf32>
    %121 = vector.broadcast %120 : vector<1x256xf32> to vector<24x256xf32>
    %122 = arith.mulf %119, %121 : vector<24x256xf32>
    %123 = vector.extract_strided_slice %15 {offsets = [0, 6], sizes = [24, 1], strides = [1, 1]} : vector<24x10xf32> to vector<24x1xf32>
    %124 = vector.broadcast %123 : vector<24x1xf32> to vector<24x256xf32>
    %125 = arith.mulf %122, %124 : vector<24x256xf32>
    %126 = arith.addf %118, %125 : vector<24x256xf32>
    %c240_i32 = arith.constant 240 : i32
    %127 = tpu.dynamic_rotate %72 by %c240_i32 dim 1 : vector<24x256xf32>, i32 -> vector<24x256xf32>
    %128 = vector.extract_strided_slice %10 {offsets = [7, 0], sizes = [1, 256], strides = [1, 1]} : vector<9x256xf32> to vector<1x256xf32>
    %129 = vector.broadcast %128 : vector<1x256xf32> to vector<24x256xf32>
    %130 = arith.mulf %127, %129 : vector<24x256xf32>
    %131 = vector.extract_strided_slice %15 {offsets = [0, 7], sizes = [24, 1], strides = [1, 1]} : vector<24x10xf32> to vector<24x1xf32>
    %132 = vector.broadcast %131 : vector<24x1xf32> to vector<24x256xf32>
    %133 = arith.mulf %130, %132 : vector<24x256xf32>
    %134 = arith.addf %126, %133 : vector<24x256xf32>
    %c239_i32 = arith.constant 239 : i32
    %135 = tpu.dynamic_rotate %72 by %c239_i32 dim 1 : vector<24x256xf32>, i32 -> vector<24x256xf32>
    %136 = vector.extract_strided_slice %10 {offsets = [8, 0], sizes = [1, 256], strides = [1, 1]} : vector<9x256xf32> to vector<1x256xf32>
    %137 = vector.broadcast %136 : vector<1x256xf32> to vector<24x256xf32>
    %138 = arith.mulf %135, %137 : vector<24x256xf32>
    %139 = vector.extract_strided_slice %15 {offsets = [0, 8], sizes = [24, 1], strides = [1, 1]} : vector<24x10xf32> to vector<24x1xf32>
    %140 = vector.broadcast %139 : vector<24x1xf32> to vector<24x256xf32>
    %141 = arith.mulf %138, %140 : vector<24x256xf32>
    %142 = arith.addf %134, %141 : vector<24x256xf32>
    %143 = vector.extract_strided_slice %142 {offsets = [0, 0], sizes = [8, 256], strides = [1, 1]} : vector<24x256xf32> to vector<8x256xf32>
    %144 = vector.extract_strided_slice %142 {offsets = [8, 0], sizes = [8, 256], strides = [1, 1]} : vector<24x256xf32> to vector<8x256xf32>
    %145 = vector.extract_strided_slice %142 {offsets = [16, 0], sizes = [8, 256], strides = [1, 1]} : vector<24x256xf32> to vector<8x256xf32>
    %146 = arith.mulf %143, %143 : vector<8x256xf32>
    %cst_23 = arith.constant dense<0.000000e+00> : vector<8xf32>
    %147 = vector.multi_reduction <add>, %146, %cst_23 [1] : vector<8x256xf32> to vector<8xf32>
    %148 = vector.shape_cast %147 : vector<8xf32> to vector<8x1xf32>
    %cst_24 = arith.constant 1.000000e-24 : f32
    %149 = vector.broadcast %cst_24 : f32 to vector<8x1xf32>
    %150 = arith.maximumf %148, %149 : vector<8x1xf32>
    %151 = math.rsqrt %150 : vector<8x1xf32>
    %152 = vector.broadcast %151 : vector<8x1xf32> to vector<8x256xf32>
    %153 = arith.mulf %143, %152 : vector<8x256xf32>
    %154 = arith.mulf %144, %144 : vector<8x256xf32>
    %cst_25 = arith.constant dense<0.000000e+00> : vector<8xf32>
    %155 = vector.multi_reduction <add>, %154, %cst_25 [1] : vector<8x256xf32> to vector<8xf32>
    %156 = vector.shape_cast %155 : vector<8xf32> to vector<8x1xf32>
    %cst_26 = arith.constant 1.000000e-24 : f32
    %157 = vector.broadcast %cst_26 : f32 to vector<8x1xf32>
    %158 = arith.maximumf %156, %157 : vector<8x1xf32>
    %159 = math.rsqrt %158 : vector<8x1xf32>
    %160 = vector.broadcast %159 : vector<8x1xf32> to vector<8x256xf32>
    %161 = arith.mulf %144, %160 : vector<8x256xf32>
    %cst_27 = arith.constant dense<0.000000e+00> : vector<8x8xf32>
    %162 = tpu.matmul %153, %161, %cst_27 {dimension_numbers = #tpu.dot_dimension_numbers<[1], [1], [0], [0], [0, 0, 1, 0], [], []>} : vector<8x256xf32>, vector<8x256xf32>, vector<8x8xf32> -> vector<8x8xf32>
    %163 = vector.broadcast %20 : vector<8x1xf32> to vector<8x8xf32>
    %164 = arith.mulf %162, %163 : vector<8x8xf32>
    %165 = arith.addf %164, %24 : vector<8x8xf32>
    %cst_28 = arith.constant dense<0xFF800000> : vector<8xf32>
    %166 = vector.multi_reduction <maximumf>, %165, %cst_28 [1] : vector<8x8xf32> to vector<8xf32>
    %167 = vector.shape_cast %166 : vector<8xf32> to vector<8x1xf32>
    %168 = vector.broadcast %167 : vector<8x1xf32> to vector<8x8xf32>
    %169 = arith.subf %165, %168 : vector<8x8xf32>
    %170 = math.exp %169 : vector<8x8xf32>
    %cst_29 = arith.constant dense<0.000000e+00> : vector<8xf32>
    %171 = vector.multi_reduction <add>, %170, %cst_29 [1] : vector<8x8xf32> to vector<8xf32>
    %172 = vector.shape_cast %171 : vector<8xf32> to vector<8x1xf32>
    %173 = tpu.reciprocal %172 {approx = true} : vector<8x1xf32> -> vector<8x1xf32>
    %174 = vector.broadcast %173 : vector<8x1xf32> to vector<8x8xf32>
    %175 = arith.mulf %170, %174 : vector<8x8xf32>
    %cst_30 = arith.constant dense<0.000000e+00> : vector<8x256xf32>
    %176 = tpu.matmul %175, %145, %cst_30 {dimension_numbers = #tpu.dot_dimension_numbers<[1], [0], [0], [1], [0, 0, 1, 1], [], []>} : vector<8x8xf32>, vector<8x256xf32>, vector<8x256xf32> -> vector<8x256xf32>
    %177 = arith.truncf %176 : vector<8x256xf32> to vector<8x256xbf16>
    %cst_31 = arith.constant dense<0.000000e+00> : vector<8x256xf32>
    %178 = tpu.matmul %12, %177, %cst_31 {dimension_numbers = #tpu.dot_dimension_numbers<[1], [0], [0], [1], [0, 0, 1, 1], [], []>} : vector<8x8xbf16>, vector<8x256xbf16>, vector<8x256xf32> -> vector<8x256xf32>
    %179 = arith.addf %3, %178 : vector<8x256xf32>
    %cst_32 = arith.constant dense<0.000000e+00> : vector<256xf32>
    %180 = vector.multi_reduction <add>, %179, %cst_32 [0] : vector<8x256xf32> to vector<256xf32>
    %181 = vector.shape_cast %180 : vector<256xf32> to vector<1x256xf32>
    %cst_33 = arith.constant 8.000000e+00 : f32
    %182 = vector.broadcast %cst_33 : f32 to vector<1x256xf32>
    %183 = arith.divf %181, %182 : vector<1x256xf32>
    %184 = vector.broadcast %183 : vector<1x256xf32> to vector<8x256xf32>
    %185 = arith.subf %179, %184 : vector<8x256xf32>
    %186 = arith.mulf %185, %185 : vector<8x256xf32>
    %cst_34 = arith.constant dense<0.000000e+00> : vector<256xf32>
    %187 = vector.multi_reduction <add>, %186, %cst_34 [0] : vector<8x256xf32> to vector<256xf32>
    %188 = vector.shape_cast %187 : vector<256xf32> to vector<1x256xf32>
    %cst_35 = arith.constant 8.000000e+00 : f32
    %189 = vector.broadcast %cst_35 : f32 to vector<1x256xf32>
    %190 = arith.divf %188, %189 : vector<1x256xf32>
    %191 = vector.broadcast %183 : vector<1x256xf32> to vector<8x256xf32>
    %192 = arith.subf %179, %191 : vector<8x256xf32>
    %cst_36 = arith.constant 9.99999974E-6 : f32
    %193 = vector.broadcast %cst_36 : f32 to vector<1x256xf32>
    %194 = arith.addf %190, %193 : vector<1x256xf32>
    %195 = math.rsqrt %194 : vector<1x256xf32>
    %196 = vector.broadcast %195 : vector<1x256xf32> to vector<8x256xf32>
    %197 = arith.mulf %192, %196 : vector<8x256xf32>
    %198 = vector.broadcast %21 : vector<8x1xf32> to vector<8x256xf32>
    %199 = arith.mulf %197, %198 : vector<8x256xf32>
    %200 = vector.broadcast %22 : vector<8x1xf32> to vector<8x256xf32>
    %201 = arith.addf %199, %200 : vector<8x256xf32>
    %202 = arith.truncf %201 : vector<8x256xf32> to vector<8x256xbf16>
    %cst_37 = arith.constant dense<0.000000e+00> : vector<16x256xf32>
    %203 = tpu.matmul %13, %202, %cst_37 {dimension_numbers = #tpu.dot_dimension_numbers<[1], [0], [0], [1], [0, 0, 1, 1], [], []>} : vector<16x8xbf16>, vector<8x256xbf16>, vector<16x256xf32> -> vector<16x256xf32>
    %204 = vector.broadcast %25 : vector<16x1xf32> to vector<16x256xf32>
    %205 = arith.addf %203, %204 : vector<16x256xf32>
    %cst_38 = arith.constant 5.000000e-01 : f32
    %206 = vector.broadcast %cst_38 : f32 to vector<16x256xf32>
    %207 = arith.mulf %206, %205 : vector<16x256xf32>
    %cst_39 = arith.constant 0.707106769 : f32
    %208 = vector.broadcast %cst_39 : f32 to vector<16x256xf32>
    %209 = arith.mulf %205, %208 : vector<16x256xf32>
    %cst_40 = arith.constant 0.000000e+00 : f32
    %210 = vector.broadcast %cst_40 : f32 to vector<16x256xf32>
    %211 = arith.cmpf oge, %209, %210 : vector<16x256xf32>
    %cst_41 = arith.constant 1.000000e+00 : f32
    %cst_42 = arith.constant -1.000000e+00 : f32
    %212 = vector.broadcast %cst_41 : f32 to vector<16x256xf32>
    %213 = vector.broadcast %cst_42 : f32 to vector<16x256xf32>
    %214 = arith.select %211, %212, %213 : vector<16x256xi1>, vector<16x256xf32>
    %215 = math.absf %209 : vector<16x256xf32>
    %cst_43 = arith.constant 0.327591091 : f32
    %216 = vector.broadcast %cst_43 : f32 to vector<16x256xf32>
    %217 = arith.mulf %216, %215 : vector<16x256xf32>
    %cst_44 = arith.constant 1.000000e+00 : f32
    %218 = vector.broadcast %cst_44 : f32 to vector<16x256xf32>
    %219 = arith.addf %218, %217 : vector<16x256xf32>
    %cst_45 = arith.constant 1.000000e+00 : f32
    %220 = vector.broadcast %cst_45 : f32 to vector<16x256xf32>
    %221 = arith.divf %220, %219 : vector<16x256xf32>
    %cst_46 = arith.constant 1.06140542 : f32
    %222 = vector.broadcast %cst_46 : f32 to vector<16x256xf32>
    %223 = arith.mulf %222, %221 : vector<16x256xf32>
    %cst_47 = arith.constant -1.45315206 : f32
    %224 = vector.broadcast %cst_47 : f32 to vector<16x256xf32>
    %225 = arith.addf %223, %224 : vector<16x256xf32>
    %226 = arith.mulf %225, %221 : vector<16x256xf32>
    %cst_48 = arith.constant 1.42141378 : f32
    %227 = vector.broadcast %cst_48 : f32 to vector<16x256xf32>
    %228 = arith.addf %226, %227 : vector<16x256xf32>
    %229 = arith.mulf %228, %221 : vector<16x256xf32>
    %cst_49 = arith.constant -0.284496725 : f32
    %230 = vector.broadcast %cst_49 : f32 to vector<16x256xf32>
    %231 = arith.addf %229, %230 : vector<16x256xf32>
    %232 = arith.mulf %231, %221 : vector<16x256xf32>
    %cst_50 = arith.constant 0.254829586 : f32
    %233 = vector.broadcast %cst_50 : f32 to vector<16x256xf32>
    %234 = arith.addf %232, %233 : vector<16x256xf32>
    %235 = arith.mulf %234, %221 : vector<16x256xf32>
    %cst_51 = arith.constant 0.000000e+00 : f32
    %236 = vector.broadcast %cst_51 : f32 to vector<16x256xf32>
    %237 = arith.subf %236, %215 : vector<16x256xf32>
    %238 = arith.mulf %237, %215 : vector<16x256xf32>
    %239 = math.exp %238 : vector<16x256xf32>
    %240 = arith.mulf %235, %239 : vector<16x256xf32>
    %cst_52 = arith.constant 1.000000e+00 : f32
    %241 = vector.broadcast %cst_52 : f32 to vector<16x256xf32>
    %242 = arith.subf %241, %240 : vector<16x256xf32>
    %243 = arith.mulf %214, %242 : vector<16x256xf32>
    %cst_53 = arith.constant 1.000000e+00 : f32
    %244 = vector.broadcast %cst_53 : f32 to vector<16x256xf32>
    %245 = arith.addf %244, %243 : vector<16x256xf32>
    %246 = arith.mulf %207, %245 : vector<16x256xf32>
    %247 = arith.truncf %246 : vector<16x256xf32> to vector<16x256xbf16>
    %cst_54 = arith.constant dense<0.000000e+00> : vector<8x256xf32>
    %248 = tpu.matmul %14, %247, %cst_54 {dimension_numbers = #tpu.dot_dimension_numbers<[1], [0], [0], [1], [0, 0, 1, 1], [], []>} : vector<8x16xbf16>, vector<16x256xbf16>, vector<8x256xf32> -> vector<8x256xf32>
    %249 = vector.broadcast %23 : vector<8x1xf32> to vector<8x256xf32>
    %250 = arith.addf %248, %249 : vector<8x256xf32>
    %251 = arith.addf %179, %250 : vector<8x256xf32>
    %c0_55 = arith.constant 0 : index
    %c0_56 = arith.constant 0 : index
    %252 = vector.load %arg8[%c0_55, %c0_56] : memref<8x256xf32, #tpu.memory_space<vmem>>, vector<8x256xf32>
    tpu.vector_store %arg8[%c0_55, %c0_56], %251 {strides = array<i32>} : memref<8x256xf32, #tpu.memory_space<vmem>>, vector<8x256xf32>,
    %c0_57 = arith.constant 0 : index
    %c0_58 = arith.constant 0 : index
    %c0_59 = arith.constant 0 : index
    %253 = vector.load %arg7[%c0_57, %c0_58, %c0_59] : memref<1x8x256xf32, #tpu.memory_space<vmem>>, vector<1x8x256xf32>
    %254 = vector.shape_cast %253 : vector<1x8x256xf32> to vector<8x256xf32>
    %255 = vector.shape_cast %251 : vector<8x256xf32> to vector<1x8x256xf32>
    tpu.vector_store %arg7[%c0_57, %c0_58, %c0_59], %255 {strides = array<i32>} : memref<1x8x256xf32, #tpu.memory_space<vmem>>, vector<1x8x256xf32>,
    return
  }
  func.func @transform_0(%arg0: i32, %arg1: i32) -> (i32, i32, i32) {
    %c0_i32 = arith.constant 0 : i32
    %c0_i32_0 = arith.constant 0 : i32
    %c0_i32_1 = arith.constant 0 : i32
    return %arg0, %c0_i32, %c0_i32_0 : i32, i32, i32
  }
  func.func @transform_1(%arg0: i32, %arg1: i32) -> (i32, i32, i32) {
    %c0_i32 = arith.constant 0 : i32
    %c0_i32_0 = arith.constant 0 : i32
    %c0_i32_1 = arith.constant 0 : i32
    return %arg0, %c0_i32, %c0_i32_0 : i32, i32, i32
  }
  func.func @transform_2(%arg0: i32, %arg1: i32) -> (i32, i32, i32) {
    %c0_i32 = arith.constant 0 : i32
    %c0_i32_0 = arith.constant 0 : i32
    %c0_i32_1 = arith.constant 0 : i32
    return %arg1, %c0_i32, %c0_i32_0 : i32, i32, i32
  }
  func.func @transform_3(%arg0: i32, %arg1: i32) -> (i32, i32, i32) {
    %c0_i32 = arith.constant 0 : i32
    %c0_i32_0 = arith.constant 0 : i32
    %c0_i32_1 = arith.constant 0 : i32
    return %arg1, %c0_i32, %c0_i32_0 : i32, i32, i32
  }
  func.func @transform_4(%arg0: i32, %arg1: i32) -> (i32, i32) {
    %c0_i32 = arith.constant 0 : i32
    %c0_i32_0 = arith.constant 0 : i32
    %c0_i32_1 = arith.constant 0 : i32
    return %c0_i32, %c0_i32_0 : i32, i32
  }
  func.func @transform_5(%arg0: i32, %arg1: i32) -> (i32, i32, i32) {
    %c0_i32 = arith.constant 0 : i32
    %c0_i32_0 = arith.constant 0 : i32
    %c0_i32_1 = arith.constant 0 : i32
    return %arg0, %c0_i32, %c0_i32_0 : i32, i32, i32
  }
}

</mosaic_0001>

<llo_original>
// kernel: multilayer_dcab.1
$region0: #{multilayer_dcab.1}
  #allocation0 [shape = 'u32[]', space=smem, size = 0x4, offset = 0x4, fixed_abs, tag = 'smem constant byte address 0x4 - core index']
  #allocation1 [shape = 'u32[144,128]{1,0:T(1,128)}', space=vmem, size = 0x12000, scoped, tag = 'internal scratch']
  #allocation2 [shape = 'f32[8,256]{1,0:T(8,128)}', space=vmem, size = 0x2000, scoped, tag = 'scratch operand']
  %s0 = inlined_call_operand.vmem [shape: f32[2,8,256], index: 0, kind: input, shape index: {}]
  %s1 = inlined_call_operand.vmem [shape: f32[2,8,256], index: 1, kind: input, shape index: {}]
  %s2 = inlined_call_operand.vmem [shape: bf16[2,24,48], index: 2, kind: input, shape index: {}]
  %s3 = inlined_call_operand.vmem [shape: f32[2,24,27], index: 3, kind: input, shape index: {}]
  %s4 = inlined_call_operand.vmem [shape: f32[9,256], index: 4, kind: input, shape index: {}]
  %s5 = inlined_call_operand.vmem [shape: f32[2,8,256], index: 5, kind: output, shape index: {}]
  %s6 = sld [smem:[#allocation0]]
  $region57: #{multilayer_dcab.1} parent=0
    _
  %s8 = ssub.s32 1, %s6
  %s9 = scalar_select 0, %s8, %s6
  loop: start=0, step=1, limit=6
  $region2: #{multilayer_dcab.1} parent=0 // loop_pre_header
    _
  $region3: #{multilayer_dcab.1} parent=0 // loop_header
    %s11 = sphi 0, %s15
    %p12 = scmp.ge.s32.totalorder %s11, 6
    %s18 = sphi 0, %s30
    %s19 = sphi 0, %s26
    %s20 = sphi 0, %s18
    %s21 = sphi 0, %s19
    %s22 = sphi 0, %s20
    %s23 = sphi 0, %s21
    %s33 = sphi 0, %s35
    %s36 = sphi 0, %s33
    %s37 = sphi 0, %s36
    %s53 = sphi 0, %s37
    %s59 = sphi 0, %s61
    %s62 = sphi 0, %s59
    %s63 = sphi 0, %s62
    %s79 = sphi 0, %s63
    %s85 = sphi 0, %s87
    %s88 = sphi 0, %s85
    %s89 = sphi 0, %s88
    %s105 = sphi 0, %s89
    %s111 = sphi 0, %s113
    %s114 = sphi 0, %s111
    %s115 = sphi 0, %s114
    %s131 = sphi 0, %s115
    %s135 = sphi 0, %s135
    %s137 = sphi 0, %s135
    %s138 = sphi 0, %s137
    %s152 = sphi 0, %s138
    %s158 = sphi 0, %s160
    %s161 = sphi 0, %s158
    %s162 = sphi 0, %s161
    %s178 = sphi 0, %s162
  $region4: #{multilayer_dcab.1} parent=0 // loop_header_branch
    %14 = sbr.rel (%p12) target = $region8
  $region5: #{multilayer_dcab.1} parent=0 // loop_body
    %s16 = ssub.s32 %s11, 1
    %s17 = ssub.s32 %s11, 2
    %s24 = sadd.s32 1, %s19
    %p25 = scmp.ge.s32.totalorder %s24, 2
    %s26 = scalar_select %p25, 0, %s24
    %s27 = sadd.s32 1, %s18
    %s28 = scalar_select %p25, %s27, %s18
    %p29 = scmp.ge.s32.totalorder %s28, 2
    %s30 = scalar_select %p29, 0, %s28
    %s31 = ssub.s32 %s18, %s30
    %p32 = scmp.eq.s32.totalorder %s31, 0
    %s34 = sadd.s32 %s33, 1
    %s35 = scalar_select %p32, %s33, %s34
    %p38 = pneg %p32
    %p39 = scmp.eq.s32.totalorder %s11, 3
    %p40 = por %p38, %p39
    %p41 = scmp.ne.s32.totalorder %s33, %s36
    %p42 = scmp.eq.s32.totalorder %s11, 0
    %p43 = por %p41, %p42
    %p44 = scmp.ne.s32.totalorder %s33, %s36
    %p45 = scmp.eq.s32.totalorder %s16, 3
    %p46 = por %p44, %p45
    %p47 = scmp.ne.s32.totalorder %s36, %s37
    %p48 = scmp.eq.s32.totalorder %s16, 0
    %p49 = por %p47, %p48
    %p50 = scmp.ne.s32.totalorder %s36, %s37
    %p51 = scmp.eq.s32.totalorder %s17, 3
    %p52 = por %p50, %p51
    %p54 = scmp.ne.s32.totalorder %s37, %s53
    %p55 = scmp.eq.s32.totalorder %s17, 0
    %p56 = por %p54, %p55
    %s57 = ssub.s32 %s18, %s30
    %p58 = scmp.eq.s32.totalorder %s57, 0
    %s60 = sadd.s32 %s59, 1
    %s61 = scalar_select %p58, %s59, %s60
    %p64 = pneg %p58
    %p65 = scmp.eq.s32.totalorder %s11, 3
    %p66 = por %p64, %p65
    %p67 = scmp.ne.s32.totalorder %s59, %s62
    %p68 = scmp.eq.s32.totalorder %s11, 0
    %p69 = por %p67, %p68
    %p70 = scmp.ne.s32.totalorder %s59, %s62
    %p71 = scmp.eq.s32.totalorder %s16, 3
    %p72 = por %p70, %p71
    %p73 = scmp.ne.s32.totalorder %s62, %s63
    %p74 = scmp.eq.s32.totalorder %s16, 0
    %p75 = por %p73, %p74
    %p76 = scmp.ne.s32.totalorder %s62, %s63
    %p77 = scmp.eq.s32.totalorder %s17, 3
    %p78 = por %p76, %p77
    %p80 = scmp.ne.s32.totalorder %s63, %s79
    %p81 = scmp.eq.s32.totalorder %s17, 0
    %p82 = por %p80, %p81
    %s83 = ssub.s32 %s19, %s26
    %p84 = scmp.eq.s32.totalorder %s83, 0
    %s86 = sadd.s32 %s85, 1
    %s87 = scalar_select %p84, %s85, %s86
    %p90 = pneg %p84
    %p91 = scmp.eq.s32.totalorder %s11, 3
    %p92 = por %p90, %p91
    %p93 = scmp.ne.s32.totalorder %s85, %s88
    %p94 = scmp.eq.s32.totalorder %s11, 0
    %p95 = por %p93, %p94
    %p96 = scmp.ne.s32.totalorder %s85, %s88
    %p97 = scmp.eq.s32.totalorder %s16, 3
    %p98 = por %p96, %p97
    %p99 = scmp.ne.s32.totalorder %s88, %s89
    %p100 = scmp.eq.s32.totalorder %s16, 0
    %p101 = por %p99, %p100
    %p102 = scmp.ne.s32.totalorder %s88, %s89
    %p103 = scmp.eq.s32.totalorder %s17, 3
    %p104 = por %p102, %p103
    %p106 = scmp.ne.s32.totalorder %s89, %s105
    %p107 = scmp.eq.s32.totalorder %s17, 0
    %p108 = por %p106, %p107
    %s109 = ssub.s32 %s19, %s26
    %p110 = scmp.eq.s32.totalorder %s109, 0
    %s112 = sadd.s32 %s111, 1
    %s113 = scalar_select %p110, %s111, %s112
    %p116 = pneg %p110
    %p117 = scmp.eq.s32.totalorder %s11, 3
    %p118 = por %p116, %p117
    %p119 = scmp.ne.s32.totalorder %s111, %s114
    %p120 = scmp.eq.s32.totalorder %s11, 0
    %p121 = por %p119, %p120
    %p122 = scmp.ne.s32.totalorder %s111, %s114
    %p123 = scmp.eq.s32.totalorder %s16, 3
    %p124 = por %p122, %p123
    %p125 = scmp.ne.s32.totalorder %s114, %s115
    %p126 = scmp.eq.s32.totalorder %s16, 0
    %p127 = por %p125, %p126
    %p128 = scmp.ne.s32.totalorder %s114, %s115
    %p129 = scmp.eq.s32.totalorder %s17, 3
    %p130 = por %p128, %p129
    %p132 = scmp.ne.s32.totalorder %s115, %s131
    %p133 = scmp.eq.s32.totalorder %s17, 0
    %p134 = por %p132, %p133
    %s136 = sadd.s32 %s135, 1
    %p139 = scmp.eq.s32.totalorder %s11, 3
    %p140 = scmp.ne.s32.totalorder %s135, %s137
    %p141 = scmp.eq.s32.totalorder %s11, 0
    %p142 = por %p140, %p141
    %p143 = scmp.ne.s32.totalorder %s135, %s137
    %p144 = scmp.eq.s32.totalorder %s16, 3
    %p145 = por %p143, %p144
    %p146 = scmp.ne.s32.totalorder %s137, %s138
    %p147 = scmp.eq.s32.totalorder %s16, 0
    %p148 = por %p146, %p147
    %p149 = scmp.ne.s32.totalorder %s137, %s138
    %p150 = scmp.eq.s32.totalorder %s17, 3
    %p151 = por %p149, %p150
    %p153 = scmp.ne.s32.totalorder %s138, %s152
    %p154 = scmp.eq.s32.totalorder %s17, 0
    %p155 = por %p153, %p154
    %s156 = ssub.s32 %s18, %s30
    %p157 = scmp.eq.s32.totalorder %s156, 0
    %s159 = sadd.s32 %s158, 1
    %s160 = scalar_select %p157, %s158, %s159
    %p163 = pneg %p157
    %p164 = scmp.eq.s32.totalorder %s11, 3
    %p165 = por %p163, %p164
    %p166 = scmp.ne.s32.totalorder %s158, %s161
    %p167 = scmp.eq.s32.totalorder %s11, 0
    %p168 = por %p166, %p167
    %p169 = scmp.ne.s32.totalorder %s158, %s161
    %p170 = scmp.eq.s32.totalorder %s16, 3
    %p171 = por %p169, %p170
    %p172 = scmp.ne.s32.totalorder %s161, %s162
    %p173 = scmp.eq.s32.totalorder %s16, 0
    %p174 = por %p172, %p173
    %p175 = scmp.ne.s32.totalorder %s161, %s162
    %p176 = scmp.eq.s32.totalorder %s17, 3
    %p177 = por %p175, %p176
    %p179 = scmp.ne.s32.totalorder %s162, %s178
    %p180 = scmp.eq.s32.totalorder %s17, 0
    %p181 = por %p179, %p180
    %p182 = scmp.le.s32.totalorder 1, %s11
    %p183 = scmp.lt.s32.totalorder %s11, 5
    %p184 = pnand %p182, %p183
    %p185 = pneg %p184
    // Predicated region
    $region9: #{multilayer_dcab.1} parent=5 // pred_check
      _
    $region10: #{multilayer_dcab.1} parent=5 // pred_check_branch
      %187 = sbr.rel (%p184) target = $region12
    $region11: #{multilayer_dcab.1} parent=5 // pred_region
      %s188 = ssub.s32 %s11, 1
      // Predicated region
      $region13: #{multilayer_dcab.1} parent=11 // pred_check
        %p189 = pneg %p148
      $region14: #{multilayer_dcab.1} parent=11 // pred_check_branch
        %191 = sbr.rel (%p189) target = $region16
      $region15: #{multilayer_dcab.1} parent=11 // pred_region
        _
      $region16: #{multilayer_dcab.1} parent=11 // pred_fallthru
        _
    $region12: #{multilayer_dcab.1} parent=5 // pred_fallthru
      _
    %p192 = scmp.lt.s32.totalorder %s11, 4
    // Predicated region
    $region17: #{multilayer_dcab.1} parent=5 // pred_check
      %p193 = pneg %p192
    $region18: #{multilayer_dcab.1} parent=5 // pred_check_branch
      %195 = sbr.rel (%p193) target = $region20
    $region19: #{multilayer_dcab.1} parent=5 // pred_region
      // Predicated region
      $region21: #{multilayer_dcab.1} parent=19 // pred_check
        %p196 = pneg %p43
      $region22: #{multilayer_dcab.1} parent=19 // pred_check_branch
        %198 = sbr.rel (%p196) target = $region24
      $region23: #{multilayer_dcab.1} parent=19 // pred_region
        %p199 = scmp.lt.s32.totalorder %s18, 1
        %s200 = scalar_select %p199, %s18, 1
        %s201 = smul.addr %s200, 2
        %s202 = smul.addr %s201, 8
        %s203 = scalar_lea.vmem %s0, %s202
      $region24: #{multilayer_dcab.1} parent=19 // pred_fallthru
        _
      // Predicated region
      $region25: #{multilayer_dcab.1} parent=19 // pred_check
        %p204 = pneg %p69
      $region26: #{multilayer_dcab.1} parent=19 // pred_check_branch
        %206 = sbr.rel (%p204) target = $region28
      $region27: #{multilayer_dcab.1} parent=19 // pred_region
        %p207 = scmp.lt.s32.totalorder %s18, 1
        %s208 = scalar_select %p207, %s18, 1
        %s209 = smul.addr %s208, 2
        %s210 = smul.addr %s209, 8
        %s211 = scalar_lea.vmem %s1, %s210
      $region28: #{multilayer_dcab.1} parent=19 // pred_fallthru
        _
      // Predicated region
      $region29: #{multilayer_dcab.1} parent=19 // pred_check
        %p212 = pneg %p95
      $region30: #{multilayer_dcab.1} parent=19 // pred_check_branch
        %214 = sbr.rel (%p212) target = $region32
      $region31: #{multilayer_dcab.1} parent=19 // pred_region
        %p215 = scmp.lt.s32.totalorder %s19, 1
        %s216 = scalar_select %p215, %s19, 1
        %s217 = smul.addr %s216, 3
        %s218 = smul.addr %s217, 4
        %s219 = scalar_lea.vmem %s2, %s218
      $region32: #{multilayer_dcab.1} parent=19 // pred_fallthru
        _
      // Predicated region
      $region33: #{multilayer_dcab.1} parent=19 // pred_check
        %p220 = pneg %p121
      $region34: #{multilayer_dcab.1} parent=19 // pred_check_branch
        %222 = sbr.rel (%p220) target = $region36
      $region35: #{multilayer_dcab.1} parent=19 // pred_region
        %p223 = scmp.lt.s32.totalorder %s19, 1
        %s224 = scalar_select %p223, %s19, 1
        %s225 = smul.addr %s224, 3
        %s226 = smul.addr %s225, 8
        %s227 = scalar_lea.vmem %s3, %s226
      $region36: #{multilayer_dcab.1} parent=19 // pred_fallthru
        _
    $region20: #{multilayer_dcab.1} parent=5 // pred_fallthru
      _
    %p228 = scmp.le.s32.totalorder 1, %s11
    %p229 = scmp.lt.s32.totalorder %s11, 5
    %p230 = pnand %p228, %p229
    %p231 = pneg %p230
    // Predicated region
    $region37: #{multilayer_dcab.1} parent=5 // pred_check
      _
    $region38: #{multilayer_dcab.1} parent=5 // pred_check_branch
      %233 = sbr.rel (%p230) target = $region40
    $region39: #{multilayer_dcab.1} parent=5 // pred_region
      %s234 = ssub.s32 %s11, 1
      %p235 = scmp.lt.s32.totalorder %s20, 1
      %s236 = scalar_select %p235, %s20, 1
      %s237 = smul.addr %s236, 2
      %s238 = smul.addr %s237, 8
      %s239 = scalar_lea.vmem %s0, %s238
      %p240 = pneg %p49
      %p241 = pneg %p46
      %p242 = scmp.lt.s32.totalorder %s20, 1
      %s243 = scalar_select %p242, %s20, 1
      %s244 = smul.addr %s243, 2
      %s245 = smul.addr %s244, 8
      %s246 = scalar_lea.vmem %s1, %s245
      %p247 = pneg %p75
      %p248 = pneg %p72
      %p249 = scmp.lt.s32.totalorder %s21, 1
      %s250 = scalar_select %p249, %s21, 1
      %s251 = smul.addr %s250, 3
      %s252 = smul.addr %s251, 4
      %s253 = scalar_lea.vmem %s2, %s252
      %p254 = pneg %p101
      %p255 = pneg %p98
      %p256 = scmp.lt.s32.totalorder %s21, 1
      %s257 = scalar_select %p256, %s21, 1
      %s258 = smul.addr %s257, 3
      %s259 = smul.addr %s258, 8
      %s260 = scalar_lea.vmem %s3, %s259
      %p261 = pneg %p127
      %p262 = pneg %p124
      %p263 = pneg %p148
      %p264 = pneg %p145
      %p265 = pneg %p174
      %p266 = pneg %p171
      %p267 = scmp.lt.s32.totalorder %s20, 1
      %s268 = scalar_select %p267, %s20, 1
      %s269 = smul.addr %s268, 2
      %s270 = smul.addr %s269, 8
      %s271 = scalar_lea.vmem %s5, %s270
      %p272 = scmp.lt.s32.totalorder %s20, 1
      %s273 = scalar_select %p272, %s20, 1
      %s274 = smul.addr %s273, 2
      %s275 = smul.addr %s274, 8
      %s276 = scalar_lea.vmem %s0, %s275
      %p277 = scmp.lt.s32.totalorder %s20, 1
      %s278 = scalar_select %p277, %s20, 1
      %s279 = smul.addr %s278, 2
      %s280 = smul.addr %s279, 8
      %s281 = scalar_lea.vmem %s1, %s280
      %p282 = scmp.lt.s32.totalorder %s21, 1
      %s283 = scalar_select %p282, %s21, 1
      %s284 = smul.addr %s283, 3
      %s285 = smul.addr %s284, 4
      %s286 = scalar_lea.vmem %s2, %s285
      %p287 = scmp.lt.s32.totalorder %s21, 1
      %s288 = scalar_select %p287, %s21, 1
      %s289 = smul.addr %s288, 3
      %s290 = smul.addr %s289, 8
      %s291 = scalar_lea.vmem %s3, %s290
      %p292 = scmp.lt.s32.totalorder %s20, 1
      %s293 = scalar_select %p292, %s20, 1
      %s294 = smul.addr %s293, 2
      %s295 = smul.addr %s294, 8
      %s296 = scalar_lea.vmem %s5, %s295
      %p298 = scmp.eq.s32.totalorder %s21, 0
      // Predicated region
      $region41: #{multilayer_dcab.1} parent=39 // pred_check
        %p299 = pneg %p298
      $region42: #{multilayer_dcab.1} parent=39 // pred_check_branch
        %301 = sbr.rel (%p299) target = $region44
      $region43: #{multilayer_dcab.1} parent=39 // pred_region
        %v302 = vld [vmem:[%s276] sm:$0xff]
        %v303 = vld [vmem:[%s276 + $0x8] sm:$0xff]
        %304 = vst [vmem:[#allocation2] sm:$0xff] %v302
        %305 = vst [vmem:[#allocation2 + $0x8] sm:$0xff] %v303
      $region44: #{multilayer_dcab.1} parent=39 // pred_fallthru
        _
      %v306 = vld [vmem:[#allocation2] sm:$0xff]
      %v307 = vld [vmem:[#allocation2 + $0x8] sm:$0xff]
      %v308 = vld [vmem:[%s281] sm:$0xff]
      %v309 = vld [vmem:[%s281 + $0x8] sm:$0xff]
      %v310 = vld [vmem:[%s286] sm:$0xf]
      %v311 = vld [vmem:[%s286 + $0x4] sm:$0xf]
      %v312 = vld [vmem:[%s286 + $0x8] sm:$0xf]
      %v313 = vld [vmem:[%s291] sm:$0xff]
      %v314 = vld [vmem:[%s291 + $0x8] sm:$0xff]
      %v315 = vld [vmem:[%s291 + $0x10] sm:$0xff]
      %v316 = vld [vmem:[%s4] sm:$0xff]
      %v317 = vld [vmem:[%s4 + $0x8] sm:$0xff]
      %v318 = vld [vmem:[%s4 + $0x10] sm:$0x1]
      %v319 = vld [vmem:[%s4 + $0x18] sm:$0x1]
      %v320 = vrot.slane %v306, 4
      %v321 = vadd.f32 %v306, %v320
      %v322 = vrot.slane %v321, 2
      %v323 = vadd.f32 %v321, %v322
      %v324 = vrot.slane %v323, 1
      %v325 = vadd.f32 %v323, %v324
      %v326 = vrot.slane %v307, 4
      %v327 = vadd.f32 %v307, %v326
      %v328 = vrot.slane %v327, 2
      %v329 = vadd.f32 %v327, %v328
      %v330 = vrot.slane %v329, 1
      %v331 = vadd.f32 %v329, %v330
      %v332 = vrcp.pop 8.0
      %v333 = vmul.f32 %v325, %v332
      %v334 = vmul.f32 %v331, %v332
      %v335 = vsub.f32 %v306, %v333
      %v336 = vsub.f32 %v307, %v334
      %v337 = vmul.f32 %v335, %v335
      %v338 = vmul.f32 %v336, %v336
      %v339 = vrot.slane %v337, 4
      %v340 = vadd.f32 %v337, %v339
      %v341 = vrot.slane %v340, 2
      %v342 = vadd.f32 %v340, %v341
      %v343 = vrot.slane %v342, 1
      %v344 = vadd.f32 %v342, %v343
      %v345 = vrot.slane %v338, 4
      %v346 = vadd.f32 %v338, %v345
      %v347 = vrot.slane %v346, 2
      %v348 = vadd.f32 %v346, %v347
      %v349 = vrot.slane %v348, 1
      %v350 = vadd.f32 %v348, %v349
      %v351 = vmul.f32 %v344, %v332
      %v352 = vmul.f32 %v350, %v332
      %v353 = vadd.f32 %v351, 1e-05
      %v354 = vadd.f32 %v352, 1e-05
      %v355 = vrsqrt.pop %v353
      %v356 = vrsqrt.pop %v354
      %v357 = vmul.f32 %v335, %v355
      %v358 = vmul.f32 %v336, %v356
      %360 = vset.pattern.permute.xlu0 10
      %361 = vperm.xlu0 %360, %v313
      %v362 = vpop.permute.xlu0 %361
      %v364 = vmul.f32 %v357, %v362
      %v365 = vmul.f32 %v358, %v362
      %366 = vset.pattern.permute.xlu0 11
      %367 = vperm.xlu0 %366, %v313
      %v368 = vpop.permute.xlu0 %367
      %v370 = vadd.f32 %v364, %v368
      %v371 = vadd.f32 %v365, %v368
      %v372 = vrot.slane %v308, 4
      %v373 = vadd.f32 %v308, %v372
      %v374 = vrot.slane %v373, 2
      %v375 = vadd.f32 %v373, %v374
      %v376 = vrot.slane %v375, 1
      %v377 = vadd.f32 %v375, %v376
      %v378 = vrot.slane %v309, 4
      %v379 = vadd.f32 %v309, %v378
      %v380 = vrot.slane %v379, 2
      %v381 = vadd.f32 %v379, %v380
      %v382 = vrot.slane %v381, 1
      %v383 = vadd.f32 %v381, %v382
      %v384 = vmul.f32 %v377, %v332
      %v385 = vmul.f32 %v383, %v332
      %v386 = vsub.f32 %v308, %v384
      %v387 = vsub.f32 %v309, %v385
      %v388 = vmul.f32 %v386, %v386
      %v389 = vmul.f32 %v387, %v387
      %v390 = vrot.slane %v388, 4
      %v391 = vadd.f32 %v388, %v390
      %v392 = vrot.slane %v391, 2
      %v393 = vadd.f32 %v391, %v392
      %v394 = vrot.slane %v393, 1
      %v395 = vadd.f32 %v393, %v394
      %v396 = vrot.slane %v389, 4
      %v397 = vadd.f32 %v389, %v396
      %v398 = vrot.slane %v397, 2
      %v399 = vadd.f32 %v397, %v398
      %v400 = vrot.slane %v399, 1
      %v401 = vadd.f32 %v399, %v400
      %v402 = vmul.f32 %v395, %v332
      %v403 = vmul.f32 %v401, %v332
      %v404 = vadd.f32 %v402, 1e-05
      %v405 = vadd.f32 %v403, 1e-05
      %v406 = vrsqrt.pop %v404
      %v407 = vrsqrt.pop %v405
      %v408 = vmul.f32 %v386, %v406
      %v409 = vmul.f32 %v387, %v407
      %410 = vset.pattern.permute.xlu0 12
      %411 = vperm.xlu0 %410, %v313
      %v412 = vpop.permute.xlu0 %411
      %v414 = vmul.f32 %v408, %v412
      %v415 = vmul.f32 %v409, %v412
      %416 = vset.pattern.permute.xlu0 13
      %417 = vperm.xlu0 %416, %v313
      %v418 = vpop.permute.xlu0 %417
      %v420 = vadd.f32 %v414, %v418
      %v421 = vadd.f32 %v415, %v418
      %v422 = vpack.c.bf16 %v420, %v370
      %v423 = vpack.c.bf16 %v421, %v371
      %v427 = vunpack.c.l.b16 %v310
      %v428 = vunpack.c.l.b16 %v311
      %v429 = vunpack.c.l.b16 %v312
      %v430 = vpack.c.b16 %v428, %v427
      %v431 = vpack.c.b16 %v429, %v429
      %vm432 = vcmask 130048
      %v434 = vsel %vm432, %v430, 0
      %v437 = vsel %vm432, %v431, 0
      %439 = vmatprep.subr.bf16.mxu0 %v423
      %440 = vmatpush1.bf16.msra.mxu0 %v422
      %441 = vmatprep.subr.bf16.mxu0 0
      %442 = vmatpush1.bf16.msra.mxu0 0
      %443 = vmatprep.subr.bf16.mxu0 0
      %444 = vmatpush1.bf16.msra.mxu0 0
      %445 = vmatprep.subr.bf16.mxu0 0
      %446 = vmatpush1.bf16.msra.mxu0 0
      %447 = vmatprep.subr.bf16.mxu0 0
      %448 = vmatpush1.bf16.msra.mxu0 0
      %449 = vmatprep.subr.bf16.mxu0 0
      %450 = vmatpush1.bf16.msra.mxu0 0
      %451 = vmatprep.subr.bf16.mxu0 0
      %452 = vmatpush1.bf16.msra.mxu0 0
      %453 = vmatprep.subr.bf16.mxu0 0
      %454 = vmatpush1.bf16.msra.mxu0 0
      %455 = vmatprep.subr.bf16.mxu0 0
      %456 = vmatpush1.bf16.msra.mxu0 0
      %457 = vmatprep.subr.bf16.mxu0 0
      %458 = vmatpush1.bf16.msra.mxu0 0
      %459 = vmatprep.subr.bf16.mxu0 0
      %460 = vmatpush1.bf16.msra.mxu0 0
      %461 = vmatprep.subr.bf16.mxu0 0
      %462 = vmatpush1.bf16.msra.mxu0 0
      %463 = vmatprep.subr.bf16.mxu0 0
      %464 = vmatpush1.bf16.msra.mxu0 0
      %465 = vmatprep.subr.bf16.mxu0 0
      %466 = vmatpush1.bf16.msra.mxu0 0
      %467 = vmatprep.subr.bf16.mxu0 0
      %468 = vmatpush1.bf16.msra.mxu0 0
      %469 = vmatprep.subr.bf16.mxu0 0
      %470 = vmatpush1.bf16.msra.mxu0 0
      %471 = vmatprep.mubr.bf16.mxu0 0
      %472 = vmatmul.mubr.bf16.gmra.mrb[0].mxu0 %v434
      %v473 = vpop.f32.mrb[0].mxu0
      %v474 = vadd.f32 0.0, %v473
      %v475 = vpop.f32.mrb[0].mxu0
      %v476 = vadd.f32 0.0, %v475
      %v477 = vpop.f32.mrb[0].mxu0
      %v478 = vadd.f32 0.0, %v477
      %v479 = vpop.f32.mrb[0].mxu0
      %v480 = vadd.f32 0.0, %v479
      %481 = vmatprep.mubr.bf16.mxu0 0
      %482 = vmatmul.mubr.bf16.gmra.mrb[0].mxu0 %v437
      %v483 = vpop.f32.mrb[0].mxu0
      %v484 = vadd.f32 0.0, %v483
      %v485 = vpop.f32.mrb[0].mxu0
      %v486 = vadd.f32 0.0, %v485
      %v487 = vpop.f32.mrb[0].mxu0
      %v488 = vpop.f32.mrb[0].mxu0
      %489 = vdwg.mxu0
      %490 = vset.pattern.permute.xlu0 4
      %491 = vperm.xlu0 %490, %v313
      %v492 = vpop.permute.xlu0 %491
      %495 = vset.pattern.permute.xlu0 4
      %496 = vperm.xlu0 %495, %v314
      %v497 = vpop.permute.xlu0 %496
      %500 = vset.pattern.permute.xlu0 4
      %501 = vperm.xlu0 %500, %v315
      %v502 = vpop.permute.xlu0 %501
      %v504 = vmul.f32 %v474, %v492
      %v505 = vmul.f32 %v476, %v492
      %v506 = vmul.f32 %v478, %v497
      %v507 = vmul.f32 %v480, %v497
      %v508 = vmul.f32 %v484, %v502
      %v509 = vmul.f32 %v486, %v502
      %510 = vset.pattern.permute.xlu0 9
      %511 = vperm.xlu0 %510, %v313
      %v512 = vpop.permute.xlu0 %511
      %514 = vset.pattern.permute.xlu0 9
      %515 = vperm.xlu0 %514, %v314
      %v516 = vpop.permute.xlu0 %515
      %518 = vset.pattern.permute.xlu0 9
      %519 = vperm.xlu0 %518, %v315
      %v520 = vpop.permute.xlu0 %519
      %v522 = vadd.f32 %v504, %v512
      %v523 = vadd.f32 %v505, %v512
      %v524 = vadd.f32 %v506, %v516
      %v525 = vadd.f32 %v507, %v516
      %v526 = vadd.f32 %v508, %v520
      %v527 = vadd.f32 %v509, %v520
      %528 = vrot.lane.b32.xlu0 %v474, 17
      %v529 = vpop.permute.xlu0 %528
      %530 = vrot.lane.b32.xlu0 %v478, 17
      %v531 = vpop.permute.xlu0 %530
      %532 = vrot.lane.b32.xlu0 %v484, 17
      %v533 = vpop.permute.xlu0 %532
      %534 = vrot.lane.b32.xlu0 %v476, 17
      %v535 = vpop.permute.xlu0 %534
      %536 = vrot.lane.b32.xlu0 %v480, 17
      %v537 = vpop.permute.xlu0 %536
      %538 = vrot.lane.b32.xlu0 %v486, 17
      %v539 = vpop.permute.xlu0 %538
      %v540 = vlaneseq
      %v541 = vand.u32 %v540, 127
      %vm542 = vcmp.lt.s32.totalorder %v541, 17
      %v543 = vsel %vm542, %v529, %v535
      %v544 = vsel %vm542, %v531, %v537
      %v545 = vsel %vm542, %v533, %v539
      %v546 = vsel %vm542, %v535, %v529
      %v547 = vsel %vm542, %v537, %v531
      %v548 = vsel %vm542, %v539, %v533
      %v549 = vlaneseq
      %v550 = vshrl.u32 %v549, 7
      %v551 = vsub.s32 0, %v550
      %v552 = vrot.slane %v316, %v551
      %v553 = vlaneseq
      %v554 = vshrl.u32 %v553, 7
      %v555 = vsub.s32 0, %v554
      %v556 = vrot.slane %v317, %v555
      %v557 = vmul.f32 %v546, %v552
      %v558 = vmul.f32 %v543, %v556
      %v559 = vmul.f32 %v547, %v552
      %v560 = vmul.f32 %v544, %v556
      %v561 = vmul.f32 %v548, %v552
      %v562 = vmul.f32 %v545, %v556
      %563 = vset.pattern.permute.xlu0 0
      %564 = vperm.xlu0 %563, %v313
      %v565 = vpop.permute.xlu0 %564
      %567 = vset.pattern.permute.xlu0 0
      %568 = vperm.xlu0 %567, %v314
      %v569 = vpop.permute.xlu0 %568
      %571 = vset.pattern.permute.xlu0 0
      %572 = vperm.xlu0 %571, %v315
      %v573 = vpop.permute.xlu0 %572
      %v575 = vmul.f32 %v557, %v565
      %v576 = vmul.f32 %v558, %v565
      %v577 = vmul.f32 %v559, %v569
      %v578 = vmul.f32 %v560, %v569
      %v579 = vmul.f32 %v561, %v573
      %v580 = vmul.f32 %v562, %v573
      %v581 = vadd.f32 %v522, %v575
      %v582 = vadd.f32 %v523, %v576
      %v583 = vadd.f32 %v524, %v577
      %v584 = vadd.f32 %v525, %v578
      %v585 = vadd.f32 %v526, %v579
      %v586 = vadd.f32 %v527, %v580
      %587 = vrot.lane.b32.xlu0 %v474, 16
      %v588 = vpop.permute.xlu0 %587
      %589 = vrot.lane.b32.xlu0 %v478, 16
      %v590 = vpop.permute.xlu0 %589
      %591 = vrot.lane.b32.xlu0 %v484, 16
      %v592 = vpop.permute.xlu0 %591
      %593 = vrot.lane.b32.xlu0 %v476, 16
      %v594 = vpop.permute.xlu0 %593
      %595 = vrot.lane.b32.xlu0 %v480, 16
      %v596 = vpop.permute.xlu0 %595
      %597 = vrot.lane.b32.xlu0 %v486, 16
      %v598 = vpop.permute.xlu0 %597
      %vm599 = vcmp.lt.s32.totalorder %v541, 16
      %v600 = vsel %vm599, %v588, %v594
      %v601 = vsel %vm599, %v590, %v596
      %v602 = vsel %vm599, %v592, %v598
      %v603 = vsel %vm599, %v594, %v588
      %v604 = vsel %vm599, %v596, %v590
      %v605 = vsel %vm599, %v598, %v592
      %v606 = vlaneseq
      %v607 = vshrl.u32 %v606, 7
      %v608 = vsub.s32 1, %v607
      %v609 = vrot.slane %v316, %v608
      %v610 = vlaneseq
      %v611 = vshrl.u32 %v610, 7
      %v612 = vsub.s32 1, %v611
      %v613 = vrot.slane %v317, %v612
      %v614 = vmul.f32 %v603, %v609
      %v615 = vmul.f32 %v600, %v613
      %v616 = vmul.f32 %v604, %v609
      %v617 = vmul.f32 %v601, %v613
      %v618 = vmul.f32 %v605, %v609
      %v619 = vmul.f32 %v602, %v613
      %620 = vset.pattern.permute.xlu0 1
      %621 = vperm.xlu0 %620, %v313
      %v622 = vpop.permute.xlu0 %621
      %624 = vset.pattern.permute.xlu0 1
      %625 = vperm.xlu0 %624, %v314
      %v626 = vpop.permute.xlu0 %625
      %628 = vset.pattern.permute.xlu0 1
      %629 = vperm.xlu0 %628, %v315
      %v630 = vpop.permute.xlu0 %629
      %v632 = vmul.f32 %v614, %v622
      %v633 = vmul.f32 %v615, %v622
      %v634 = vmul.f32 %v616, %v626
      %v635 = vmul.f32 %v617, %v626
      %v636 = vmul.f32 %v618, %v630
      %v637 = vmul.f32 %v619, %v630
      %v638 = vadd.f32 %v581, %v632
      %v639 = vadd.f32 %v582, %v633
      %v640 = vadd.f32 %v583, %v634
      %v641 = vadd.f32 %v584, %v635
      %v642 = vadd.f32 %v585, %v636
      %v643 = vadd.f32 %v586, %v637
      %644 = vrot.lane.b32.xlu0 %v474, 15
      %v645 = vpop.permute.xlu0 %644
      %646 = vrot.lane.b32.xlu0 %v478, 15
      %v647 = vpop.permute.xlu0 %646
      %648 = vrot.lane.b32.xlu0 %v484, 15
      %v649 = vpop.permute.xlu0 %648
      %650 = vrot.lane.b32.xlu0 %v476, 15
      %v651 = vpop.permute.xlu0 %650
      %652 = vrot.lane.b32.xlu0 %v480, 15
      %v653 = vpop.permute.xlu0 %652
      %654 = vrot.lane.b32.xlu0 %v486, 15
      %v655 = vpop.permute.xlu0 %654
      %vm656 = vcmp.lt.s32.totalorder %v541, 15
      %v657 = vsel %vm656, %v645, %v651
      %v658 = vsel %vm656, %v647, %v653
      %v659 = vsel %vm656, %v649, %v655
      %v660 = vsel %vm656, %v651, %v645
      %v661 = vsel %vm656, %v653, %v647
      %v662 = vsel %vm656, %v655, %v649
      %v663 = vlaneseq
      %v664 = vshrl.u32 %v663, 7
      %v665 = vsub.s32 2, %v664
      %v666 = vrot.slane %v316, %v665
      %v667 = vlaneseq
      %v668 = vshrl.u32 %v667, 7
      %v669 = vsub.s32 2, %v668
      %v670 = vrot.slane %v317, %v669
      %v671 = vmul.f32 %v660, %v666
      %v672 = vmul.f32 %v657, %v670
      %v673 = vmul.f32 %v661, %v666
      %v674 = vmul.f32 %v658, %v670
      %v675 = vmul.f32 %v662, %v666
      %v676 = vmul.f32 %v659, %v670
      %677 = vset.pattern.permute.xlu0 2
      %678 = vperm.xlu0 %677, %v313
      %v679 = vpop.permute.xlu0 %678
      %681 = vset.pattern.permute.xlu0 2
      %682 = vperm.xlu0 %681, %v314
      %v683 = vpop.permute.xlu0 %682
      %685 = vset.pattern.permute.xlu0 2
      %686 = vperm.xlu0 %685, %v315
      %v687 = vpop.permute.xlu0 %686
      %v689 = vmul.f32 %v671, %v679
      %v690 = vmul.f32 %v672, %v679
      %v691 = vmul.f32 %v673, %v683
      %v692 = vmul.f32 %v674, %v683
      %v693 = vmul.f32 %v675, %v687
      %v694 = vmul.f32 %v676, %v687
      %v695 = vadd.f32 %v638, %v689
      %v696 = vadd.f32 %v639, %v690
      %v697 = vadd.f32 %v640, %v691
      %v698 = vadd.f32 %v641, %v692
      %v699 = vadd.f32 %v642, %v693
      %v700 = vadd.f32 %v643, %v694
      %701 = vrot.lane.b32.xlu0 %v474, 1
      %v702 = vpop.permute.xlu0 %701
      %703 = vrot.lane.b32.xlu0 %v478, 1
      %v704 = vpop.permute.xlu0 %703
      %705 = vrot.lane.b32.xlu0 %v484, 1
      %v706 = vpop.permute.xlu0 %705
      %707 = vrot.lane.b32.xlu0 %v476, 1
      %v708 = vpop.permute.xlu0 %707
      %709 = vrot.lane.b32.xlu0 %v480, 1
      %v710 = vpop.permute.xlu0 %709
      %711 = vrot.lane.b32.xlu0 %v486, 1
      %v712 = vpop.permute.xlu0 %711
      %vm713 = vcmp.lt.s32.totalorder %v541, 1
      %v714 = vsel %vm713, %v702, %v708
      %v715 = vsel %vm713, %v704, %v710
      %v716 = vsel %vm713, %v706, %v712
      %v717 = vsel %vm713, %v708, %v702
      %v718 = vsel %vm713, %v710, %v704
      %v719 = vsel %vm713, %v712, %v706
      %v720 = vlaneseq
      %v721 = vshrl.u32 %v720, 7
      %v722 = vsub.s32 3, %v721
      %v723 = vrot.slane %v316, %v722
      %v724 = vlaneseq
      %v725 = vshrl.u32 %v724, 7
      %v726 = vsub.s32 3, %v725
      %v727 = vrot.slane %v317, %v726
      %v728 = vmul.f32 %v717, %v723
      %v729 = vmul.f32 %v714, %v727
      %v730 = vmul.f32 %v718, %v723
      %v731 = vmul.f32 %v715, %v727
      %v732 = vmul.f32 %v719, %v723
      %v733 = vmul.f32 %v716, %v727
      %734 = vset.pattern.permute.xlu0 3
      %735 = vperm.xlu0 %734, %v313
      %v736 = vpop.permute.xlu0 %735
      %738 = vset.pattern.permute.xlu0 3
      %739 = vperm.xlu0 %738, %v314
      %v740 = vpop.permute.xlu0 %739
      %742 = vset.pattern.permute.xlu0 3
      %743 = vperm.xlu0 %742, %v315
      %v744 = vpop.permute.xlu0 %743
      %v746 = vmul.f32 %v728, %v736
      %v747 = vmul.f32 %v729, %v736
      %v748 = vmul.f32 %v730, %v740
      %v749 = vmul.f32 %v731, %v740
      %v750 = vmul.f32 %v732, %v744
      %v751 = vmul.f32 %v733, %v744
      %v752 = vadd.f32 %v695, %v746
      %v753 = vadd.f32 %v696, %v747
      %v754 = vadd.f32 %v697, %v748
      %v755 = vadd.f32 %v698, %v749
      %v756 = vadd.f32 %v699, %v750
      %v757 = vadd.f32 %v700, %v751
      %758 = vrot.lane.b32.xlu0 %v474, 127
      %v759 = vpop.permute.xlu0 %758
      %760 = vrot.lane.b32.xlu0 %v478, 127
      %v761 = vpop.permute.xlu0 %760
      %762 = vrot.lane.b32.xlu0 %v484, 127
      %v763 = vpop.permute.xlu0 %762
      %764 = vrot.lane.b32.xlu0 %v476, 127
      %v765 = vpop.permute.xlu0 %764
      %766 = vrot.lane.b32.xlu0 %v480, 127
      %v767 = vpop.permute.xlu0 %766
      %768 = vrot.lane.b32.xlu0 %v486, 127
      %v769 = vpop.permute.xlu0 %768
      %vm770 = vcmp.lt.s32.totalorder %v541, 127
      %v771 = vsel %vm770, %v759, %v765
      %v772 = vsel %vm770, %v761, %v767
      %v773 = vsel %vm770, %v763, %v769
      %v774 = vsel %vm770, %v765, %v759
      %v775 = vsel %vm770, %v767, %v761
      %v776 = vsel %vm770, %v769, %v763
      %v777 = vlaneseq
      %v778 = vshrl.u32 %v777, 7
      %v779 = vsub.s32 5, %v778
      %v780 = vrot.slane %v316, %v779
      %v781 = vlaneseq
      %v782 = vshrl.u32 %v781, 7
      %v783 = vsub.s32 5, %v782
      %v784 = vrot.slane %v317, %v783
      %v785 = vmul.f32 %v771, %v780
      %v786 = vmul.f32 %v774, %v784
      %v787 = vmul.f32 %v772, %v780
      %v788 = vmul.f32 %v775, %v784
      %v789 = vmul.f32 %v773, %v780
      %v790 = vmul.f32 %v776, %v784
      %791 = vset.pattern.permute.xlu0 5
      %792 = vperm.xlu0 %791, %v313
      %v793 = vpop.permute.xlu0 %792
      %795 = vset.pattern.permute.xlu0 5
      %796 = vperm.xlu0 %795, %v314
      %v797 = vpop.permute.xlu0 %796
      %799 = vset.pattern.permute.xlu0 5
      %800 = vperm.xlu0 %799, %v315
      %v801 = vpop.permute.xlu0 %800
      %v803 = vmul.f32 %v785, %v793
      %v804 = vmul.f32 %v786, %v793
      %v805 = vmul.f32 %v787, %v797
      %v806 = vmul.f32 %v788, %v797
      %v807 = vmul.f32 %v789, %v801
      %v808 = vmul.f32 %v790, %v801
      %v809 = vadd.f32 %v752, %v803
      %v810 = vadd.f32 %v753, %v804
      %v811 = vadd.f32 %v754, %v805
      %v812 = vadd.f32 %v755, %v806
      %v813 = vadd.f32 %v756, %v807
      %v814 = vadd.f32 %v757, %v808
      %815 = vrot.lane.b32.xlu0 %v474, 113
      %v816 = vpop.permute.xlu0 %815
      %817 = vrot.lane.b32.xlu0 %v478, 113
      %v818 = vpop.permute.xlu0 %817
      %819 = vrot.lane.b32.xlu0 %v484, 113
      %v820 = vpop.permute.xlu0 %819
      %821 = vrot.lane.b32.xlu0 %v476, 113
      %v822 = vpop.permute.xlu0 %821
      %823 = vrot.lane.b32.xlu0 %v480, 113
      %v824 = vpop.permute.xlu0 %823
      %825 = vrot.lane.b32.xlu0 %v486, 113
      %v826 = vpop.permute.xlu0 %825
      %vm827 = vcmp.lt.s32.totalorder %v541, 113
      %v828 = vsel %vm827, %v816, %v822
      %v829 = vsel %vm827, %v818, %v824
      %v830 = vsel %vm827, %v820, %v826
      %v831 = vsel %vm827, %v822, %v816
      %v832 = vsel %vm827, %v824, %v818
      %v833 = vsel %vm827, %v826, %v820
      %v834 = vlaneseq
      %v835 = vshrl.u32 %v834, 7
      %v836 = vsub.s32 6, %v835
      %v837 = vrot.slane %v316, %v836
      %v838 = vlaneseq
      %v839 = vshrl.u32 %v838, 7
      %v840 = vsub.s32 6, %v839
      %v841 = vrot.slane %v317, %v840
      %v842 = vmul.f32 %v828, %v837
      %v843 = vmul.f32 %v831, %v841
      %v844 = vmul.f32 %v829, %v837
      %v845 = vmul.f32 %v832, %v841
      %v846 = vmul.f32 %v830, %v837
      %v847 = vmul.f32 %v833, %v841
      %848 = vset.pattern.permute.xlu0 6
      %849 = vperm.xlu0 %848, %v313
      %v850 = vpop.permute.xlu0 %849
      %852 = vset.pattern.permute.xlu0 6
      %853 = vperm.xlu0 %852, %v314
      %v854 = vpop.permute.xlu0 %853
      %856 = vset.pattern.permute.xlu0 6
      %857 = vperm.xlu0 %856, %v315
      %v858 = vpop.permute.xlu0 %857
      %v860 = vmul.f32 %v842, %v850
      %v861 = vmul.f32 %v843, %v850
      %v862 = vmul.f32 %v844, %v854
      %v863 = vmul.f32 %v845, %v854
      %v864 = vmul.f32 %v846, %v858
      %v865 = vmul.f32 %v847, %v858
      %v866 = vadd.f32 %v809, %v860
      %v867 = vadd.f32 %v810, %v861
      %v868 = vadd.f32 %v811, %v862
      %v869 = vadd.f32 %v812, %v863
      %v870 = vadd.f32 %v813, %v864
      %v871 = vadd.f32 %v814, %v865
      %872 = vrot.lane.b32.xlu0 %v474, 112
      %v873 = vpop.permute.xlu0 %872
      %874 = vrot.lane.b32.xlu0 %v478, 112
      %v875 = vpop.permute.xlu0 %874
      %876 = vrot.lane.b32.xlu0 %v484, 112
      %v877 = vpop.permute.xlu0 %876
      %878 = vrot.lane.b32.xlu0 %v476, 112
      %v879 = vpop.permute.xlu0 %878
      %880 = vrot.lane.b32.xlu0 %v480, 112
      %v881 = vpop.permute.xlu0 %880
      %882 = vrot.lane.b32.xlu0 %v486, 112
      %v883 = vpop.permute.xlu0 %882
      %vm884 = vcmp.lt.s32.totalorder %v541, 112
      %v885 = vsel %vm884, %v873, %v879
      %v886 = vsel %vm884, %v875, %v881
      %v887 = vsel %vm884, %v877, %v883
      %v888 = vsel %vm884, %v879, %v873
      %v889 = vsel %vm884, %v881, %v875
      %v890 = vsel %vm884, %v883, %v877
      %v891 = vlaneseq
      %v892 = vshrl.u32 %v891, 7
      %v893 = vsub.s32 7, %v892
      %v894 = vrot.slane %v316, %v893
      %v895 = vlaneseq
      %v896 = vshrl.u32 %v895, 7
      %v897 = vsub.s32 7, %v896
      %v898 = vrot.slane %v317, %v897
      %v899 = vmul.f32 %v885, %v894
      %v900 = vmul.f32 %v888, %v898
      %v901 = vmul.f32 %v886, %v894
      %v902 = vmul.f32 %v889, %v898
      %v903 = vmul.f32 %v887, %v894
      %v904 = vmul.f32 %v890, %v898
      %905 = vset.pattern.permute.xlu0 7
      %906 = vperm.xlu0 %905, %v313
      %v907 = vpop.permute.xlu0 %906
      %909 = vset.pattern.permute.xlu0 7
      %910 = vperm.xlu0 %909, %v314
      %v911 = vpop.permute.xlu0 %910
      %913 = vset.pattern.permute.xlu0 7
      %914 = vperm.xlu0 %913, %v315
      %v915 = vpop.permute.xlu0 %914
      %v917 = vmul.f32 %v899, %v907
      %v918 = vmul.f32 %v900, %v907
      %v919 = vmul.f32 %v901, %v911
      %v920 = vmul.f32 %v902, %v911
      %v921 = vmul.f32 %v903, %v915
      %v922 = vmul.f32 %v904, %v915
      %v923 = vadd.f32 %v866, %v917
      %v924 = vadd.f32 %v867, %v918
      %v925 = vadd.f32 %v868, %v919
      %v926 = vadd.f32 %v869, %v920
      %v927 = vadd.f32 %v870, %v921
      %v928 = vadd.f32 %v871, %v922
      %929 = vrot.lane.b32.xlu0 %v474, 111
      %v930 = vpop.permute.xlu0 %929
      %931 = vrot.lane.b32.xlu0 %v478, 111
      %v932 = vpop.permute.xlu0 %931
      %933 = vrot.lane.b32.xlu0 %v484, 111
      %v934 = vpop.permute.xlu0 %933
      %935 = vrot.lane.b32.xlu0 %v476, 111
      %v936 = vpop.permute.xlu0 %935
      %937 = vrot.lane.b32.xlu0 %v480, 111
      %v938 = vpop.permute.xlu0 %937
      %939 = vrot.lane.b32.xlu0 %v486, 111
      %v940 = vpop.permute.xlu0 %939
      %vm941 = vcmp.lt.s32.totalorder %v541, 111
      %v942 = vsel %vm941, %v930, %v936
      %v943 = vsel %vm941, %v932, %v938
      %v944 = vsel %vm941, %v934, %v940
      %v945 = vsel %vm941, %v936, %v930
      %v946 = vsel %vm941, %v938, %v932
      %v947 = vsel %vm941, %v940, %v934
      %v948 = vlaneseq
      %v949 = vshrl.u32 %v948, 7
      %v950 = vsub.s32 0, %v949
      %v951 = vrot.slane %v318, %v950
      %v952 = vlaneseq
      %v953 = vshrl.u32 %v952, 7
      %v954 = vsub.s32 0, %v953
      %v955 = vrot.slane %v319, %v954
      %v956 = vmul.f32 %v942, %v951
      %v957 = vmul.f32 %v945, %v955
      %v958 = vmul.f32 %v943, %v951
      %v959 = vmul.f32 %v946, %v955
      %v960 = vmul.f32 %v944, %v951
      %v961 = vmul.f32 %v947, %v955
      %962 = vset.pattern.permute.xlu0 8
      %963 = vperm.xlu0 %962, %v313
      %v964 = vpop.permute.xlu0 %963
      %966 = vset.pattern.permute.xlu0 8
      %967 = vperm.xlu0 %966, %v314
      %v968 = vpop.permute.xlu0 %967
      %970 = vset.pattern.permute.xlu0 8
      %971 = vperm.xlu0 %970, %v315
      %v972 = vpop.permute.xlu0 %971
      %v974 = vmul.f32 %v956, %v964
      %v975 = vmul.f32 %v957, %v964
      %v976 = vmul.f32 %v958, %v968
      %v977 = vmul.f32 %v959, %v968
      %v978 = vmul.f32 %v960, %v972
      %v979 = vmul.f32 %v961, %v972
      %v980 = vadd.f32 %v923, %v974
      %v981 = vadd.f32 %v924, %v975
      %v982 = vadd.f32 %v925, %v976
      %v983 = vadd.f32 %v926, %v977
      %v984 = vadd.f32 %v927, %v978
      %v985 = vadd.f32 %v928, %v979
      %v986 = vmul.f32 %v980, %v980
      %v987 = vmul.f32 %v981, %v981
      %v988 = vadd.f32 %v986, %v987
      %989 = vadd.xlane.f32.xlu0 %v988
      %v990 = vpop.xlane.xlu0 %989
      %v991 = vmax.f32 %v990, 1e-24
      %v992 = vrsqrt.pop %v991
      %v993 = vmul.f32 %v980, %v992
      %v994 = vmul.f32 %v981, %v992
      %v995 = vmul.f32 %v982, %v982
      %v996 = vmul.f32 %v983, %v983
      %v997 = vadd.f32 %v995, %v996
      %998 = vadd.xlane.f32.xlu0 %v997
      %v999 = vpop.xlane.xlu0 %998
      %v1000 = vmax.f32 %v999, 1e-24
      %v1001 = vrsqrt.pop %v1000
      %v1002 = vmul.f32 %v982, %v1001
      %v1003 = vmul.f32 %v983, %v1001
      %1004 = vmatprep.subr.mxu0 %v1003
      %1005 = vmatpush1.xpose.msra.mxu0 %v1002
      %1006 = vmatprep.subr.mxu0 0.0
      %1007 = vmatpush1.xpose.msra.mxu0 0.0
      %1008 = vmatprep.subr.mxu0 0.0
      %1009 = vmatpush1.xpose.msra.mxu0 0.0
      %1010 = vmatprep.subr.mxu0 0.0
      %1011 = vmatpush1.xpose.msra.mxu0 0.0
      %1012 = vmatprep.subr.mxu0 0.0
      %1013 = vmatpush1.xpose.msra.mxu0 0.0
      %1014 = vmatprep.subr.mxu0 0.0
      %1015 = vmatpush1.xpose.msra.mxu0 0.0
      %1016 = vmatprep.subr.mxu0 0.0
      %1017 = vmatpush1.xpose.msra.mxu0 0.0
      %1018 = vmatprep.subr.mxu0 0.0
      %1019 = vmatpush1.xpose.msra.mxu0 0.0
      %1020 = vmatprep.subr.mxu0 0.0
      %1021 = vmatpush1.xpose.msra.mxu0 0.0
      %1022 = vmatprep.subr.mxu0 0.0
      %1023 = vmatpush1.xpose.msra.mxu0 0.0
      %1024 = vmatprep.subr.mxu0 0.0
      %1025 = vmatpush1.xpose.msra.mxu0 0.0
      %1026 = vmatprep.subr.mxu0 0.0
      %1027 = vmatpush1.xpose.msra.mxu0 0.0
      %1028 = vmatprep.subr.mxu0 0.0
      %1029 = vmatpush1.xpose.msra.mxu0 0.0
      %1030 = vmatprep.subr.mxu0 0.0
      %1031 = vmatpush1.xpose.msra.mxu0 0.0
      %1032 = vmatprep.subr.mxu0 0.0
      %1033 = vmatpush1.xpose.msra.mxu0 0.0
      %1034 = vmatprep.subr.mxu0 0.0
      %1035 = vmatpush1.xpose.msra.mxu0 0.0
      %1036 = vmatprep.subr.mxu0 0.0
      %1037 = vmatpush1.xpose.msra.mxu0 0.0
      %1038 = vmatprep.subr.mxu0 0.0
      %1039 = vmatpush1.xpose.msra.mxu0 0.0
      %1040 = vmatprep.subr.mxu0 0.0
      %1041 = vmatpush1.xpose.msra.mxu0 0.0
      %1042 = vmatprep.subr.mxu0 0.0
      %1043 = vmatpush1.xpose.msra.mxu0 0.0
      %1044 = vmatprep.subr.mxu0 0.0
      %1045 = vmatpush1.xpose.msra.mxu0 0.0
      %1046 = vmatprep.subr.mxu0 0.0
      %1047 = vmatpush1.xpose.msra.mxu0 0.0
      %1048 = vmatprep.subr.mxu0 0.0
      %1049 = vmatpush1.xpose.msra.mxu0 0.0
      %1050 = vmatprep.subr.mxu0 0.0
      %1051 = vmatpush1.xpose.msra.mxu0 0.0
      %1052 = vmatprep.subr.mxu0 0.0
      %1053 = vmatpush1.xpose.msra.mxu0 0.0
      %1054 = vmatprep.subr.mxu0 0.0
      %1055 = vmatpush1.xpose.msra.mxu0 0.0
      %1056 = vmatprep.subr.mxu0 0.0
      %1057 = vmatpush1.xpose.msra.mxu0 0.0
      %1058 = vmatprep.subr.mxu0 0.0
      %1059 = vmatpush1.xpose.msra.mxu0 0.0
      %1060 = vmatprep.subr.mxu0 0.0
      %1061 = vmatpush1.xpose.msra.mxu0 0.0
      %1062 = vmatprep.subr.mxu0 0.0
      %1063 = vmatpush1.xpose.msra.mxu0 0.0
      %1064 = vmatprep.subr.mxu0 0.0
      %1065 = vmatpush1.xpose.msra.mxu0 0.0
      %1066 = vmatprep.subr.mxu0 0.0
      %1067 = vmatpush1.xpose.msra.mxu0 0.0
      %1068 = vmatprep.mubr.f32.mxu0 %v994
      %1069 = vmatmul.mubr.f32.gmra.mrb[0].mxu0 %v993
      %v1070 = vpop.f32.mrb[0].mxu0
      %v1071 = vadd.f32 0.0, %v1070
      %v1072 = vpop.f32.mrb[0].mxu0
      %1073 = vdwg.mxu0
      %1074 = vset.pattern.permute.xlu0 14
      %1075 = vperm.xlu0 %1074, %v313
      %v1076 = vpop.permute.xlu0 %1075
      %v1078 = vmul.f32 %v1071, %v1076
      %1079 = vrot.lane.b32.xlu0 %v313, 110
      %v1080 = vpop.permute.xlu0 %1079
      %v1082 = vadd.f32 %v1078, %v1080
      %vm1083 = vcmask 64512
      %v1084 = vsel %vm1083, %v1082, -inf
      %1085 = vmax.xlane.f32.xlu0 %v1084
      %v1086 = vpop.xlane.xlu0 %1085
      %v1087 = vsub.f32 %v1082, %v1086
      %v1088 = vmul.f32 %v1087, 1.442695
      %v1089 = vpow.pop %v1088
      %v1090 = vsel %vm1083, %v1089, 0.0
      %1091 = vadd.xlane.f32.xlu0 %v1090
      %v1092 = vpop.xlane.xlu0 %1091
      %v1093 = vrcp.pop %v1092
      %v1094 = vmul.f32 %v1089, %v1093
      %v1096 = vsel %vm1083, %v1094, 0
      %1098 = vmatprep.subr.mxu0 %v985
      %1099 = vmatpush1.msra.mxu0 %v984
      %1100 = vmatprep.subr.mxu0 0.0
      %1101 = vmatpush1.msra.mxu0 0.0
      %1102 = vmatprep.subr.mxu0 0.0
      %1103 = vmatpush1.msra.mxu0 0.0
      %1104 = vmatprep.subr.mxu0 0.0
      %1105 = vmatpush1.msra.mxu0 0.0
      %1106 = vmatprep.subr.mxu0 0.0
      %1107 = vmatpush1.msra.mxu0 0.0
      %1108 = vmatprep.subr.mxu0 0.0
      %1109 = vmatpush1.msra.mxu0 0.0
      %1110 = vmatprep.subr.mxu0 0.0
      %1111 = vmatpush1.msra.mxu0 0.0
      %1112 = vmatprep.subr.mxu0 0.0
      %1113 = vmatpush1.msra.mxu0 0.0
      %1114 = vmatprep.subr.mxu0 0.0
      %1115 = vmatpush1.msra.mxu0 0.0
      %1116 = vmatprep.subr.mxu0 0.0
      %1117 = vmatpush1.msra.mxu0 0.0
      %1118 = vmatprep.subr.mxu0 0.0
      %1119 = vmatpush1.msra.mxu0 0.0
      %1120 = vmatprep.subr.mxu0 0.0
      %1121 = vmatpush1.msra.mxu0 0.0
      %1122 = vmatprep.subr.mxu0 0.0
      %1123 = vmatpush1.msra.mxu0 0.0
      %1124 = vmatprep.subr.mxu0 0.0
      %1125 = vmatpush1.msra.mxu0 0.0
      %1126 = vmatprep.subr.mxu0 0.0
      %1127 = vmatpush1.msra.mxu0 0.0
      %1128 = vmatprep.subr.mxu0 0.0
      %1129 = vmatpush1.msra.mxu0 0.0
      %1130 = vmatprep.subr.mxu0 0.0
      %1131 = vmatpush1.msra.mxu0 0.0
      %1132 = vmatprep.subr.mxu0 0.0
      %1133 = vmatpush1.msra.mxu0 0.0
      %1134 = vmatprep.subr.mxu0 0.0
      %1135 = vmatpush1.msra.mxu0 0.0
      %1136 = vmatprep.subr.mxu0 0.0
      %1137 = vmatpush1.msra.mxu0 0.0
      %1138 = vmatprep.subr.mxu0 0.0
      %1139 = vmatpush1.msra.mxu0 0.0
      %1140 = vmatprep.subr.mxu0 0.0
      %1141 = vmatpush1.msra.mxu0 0.0
      %1142 = vmatprep.subr.mxu0 0.0
      %1143 = vmatpush1.msra.mxu0 0.0
      %1144 = vmatprep.subr.mxu0 0.0
      %1145 = vmatpush1.msra.mxu0 0.0
      %1146 = vmatprep.subr.mxu0 0.0
      %1147 = vmatpush1.msra.mxu0 0.0
      %1148 = vmatprep.subr.mxu0 0.0
      %1149 = vmatpush1.msra.mxu0 0.0
      %1150 = vmatprep.subr.mxu0 0.0
      %1151 = vmatpush1.msra.mxu0 0.0
      %1152 = vmatprep.subr.mxu0 0.0
      %1153 = vmatpush1.msra.mxu0 0.0
      %1154 = vmatprep.subr.mxu0 0.0
      %1155 = vmatpush1.msra.mxu0 0.0
      %1156 = vmatprep.subr.mxu0 0.0
      %1157 = vmatpush1.msra.mxu0 0.0
      %1158 = vmatprep.subr.mxu0 0.0
      %1159 = vmatpush1.msra.mxu0 0.0
      %1160 = vmatprep.subr.mxu0 0.0
      %1161 = vmatpush1.msra.mxu0 0.0
      %1162 = vmatprep.mubr.f32.mxu0 0.0
      %1163 = vmatmul.mubr.f32.gmra.mrb[0].mxu0 %v1096
      %v1164 = vpop.f32.mrb[0].mxu0
      %v1165 = vadd.f32 0.0, %v1164
      %v1166 = vpop.f32.mrb[0].mxu0
      %v1167 = vadd.f32 0.0, %v1166
      %1168 = vdwg.mxu0
      %v1169 = vpack.c.bf16 %v1165, %v1165
      %v1170 = vpack.c.bf16 %v1167, %v1167
      %v1171 = vpack.c.b16 %v427, %v427
      %1172 = vrot.lane.b32.xlu0 %v1171, 112
      %v1173 = vpop.permute.xlu0 %1172
      %v1175 = vsel %vm1083, %v1173, 0
      %vm1177 = vcmask 1043456
      %v1179 = vsel %vm1177, %v1169, 0
      %v1182 = vsel %vm1177, %v1170, 0
      %1184 = vmatprep.subr.bf16.mxu0 %v1182
      %1185 = vmatpush1.bf16.msra.mxu0 %v1179
      %1186 = vmatprep.subr.bf16.mxu0 0
      %1187 = vmatpush1.bf16.msra.mxu0 0
      %1188 = vmatprep.subr.bf16.mxu0 0
      %1189 = vmatpush1.bf16.msra.mxu0 0
      %1190 = vmatprep.subr.bf16.mxu0 0
      %1191 = vmatpush1.bf16.msra.mxu0 0
      %1192 = vmatprep.subr.bf16.mxu0 0
      %1193 = vmatpush1.bf16.msra.mxu0 0
      %1194 = vmatprep.subr.bf16.mxu0 0
      %1195 = vmatpush1.bf16.msra.mxu0 0
      %1196 = vmatprep.subr.bf16.mxu0 0
      %1197 = vmatpush1.bf16.msra.mxu0 0
      %1198 = vmatprep.subr.bf16.mxu0 0
      %1199 = vmatpush1.bf16.msra.mxu0 0
      %1200 = vmatprep.subr.bf16.mxu0 0
      %1201 = vmatpush1.bf16.msra.mxu0 0
      %1202 = vmatprep.subr.bf16.mxu0 0
      %1203 = vmatpush1.bf16.msra.mxu0 0
      %1204 = vmatprep.subr.bf16.mxu0 0
      %1205 = vmatpush1.bf16.msra.mxu0 0
      %1206 = vmatprep.subr.bf16.mxu0 0
      %1207 = vmatpush1.bf16.msra.mxu0 0
      %1208 = vmatprep.subr.bf16.mxu0 0
      %1209 = vmatpush1.bf16.msra.mxu0 0
      %1210 = vmatprep.subr.bf16.mxu0 0
      %1211 = vmatpush1.bf16.msra.mxu0 0
      %1212 = vmatprep.subr.bf16.mxu0 0
      %1213 = vmatpush1.bf16.msra.mxu0 0
      %1214 = vmatprep.subr.bf16.mxu0 0
      %1215 = vmatpush1.bf16.msra.mxu0 0
      %1216 = vmatprep.mubr.bf16.mxu0 0
      %1217 = vmatmul.mubr.bf16.gmra.mrb[0].mxu0 %v1175
      %v1218 = vpop.f32.mrb[0].mxu0
      %v1219 = vadd.f32 0.0, %v1218
      %v1220 = vpop.f32.mrb[0].mxu0
      %v1221 = vadd.f32 0.0, %v1220
      %v1222 = vpop.f32.mrb[0].mxu0
      %v1223 = vpop.f32.mrb[0].mxu0
      %1224 = vdwg.mxu0
      %v1225 = vadd.f32 %v306, %v1219
      %v1226 = vadd.f32 %v307, %v1221
      %v1227 = vrot.slane %v1225, 4
      %v1228 = vadd.f32 %v1225, %v1227
      %v1229 = vrot.slane %v1228, 2
      %v1230 = vadd.f32 %v1228, %v1229
      %v1231 = vrot.slane %v1230, 1
      %v1232 = vadd.f32 %v1230, %v1231
      %v1233 = vrot.slane %v1226, 4
      %v1234 = vadd.f32 %v1226, %v1233
      %v1235 = vrot.slane %v1234, 2
      %v1236 = vadd.f32 %v1234, %v1235
      %v1237 = vrot.slane %v1236, 1
      %v1238 = vadd.f32 %v1236, %v1237
      %v1239 = vmul.f32 %v1232, %v332
      %v1240 = vmul.f32 %v1238, %v332
      %v1241 = vsub.f32 %v1225, %v1239
      %v1242 = vsub.f32 %v1226, %v1240
      %v1243 = vmul.f32 %v1241, %v1241
      %v1244 = vmul.f32 %v1242, %v1242
      %v1245 = vrot.slane %v1243, 4
      %v1246 = vadd.f32 %v1243, %v1245
      %v1247 = vrot.slane %v1246, 2
      %v1248 = vadd.f32 %v1246, %v1247
      %v1249 = vrot.slane %v1248, 1
      %v1250 = vadd.f32 %v1248, %v1249
      %v1251 = vrot.slane %v1244, 4
      %v1252 = vadd.f32 %v1244, %v1251
      %v1253 = vrot.slane %v1252, 2
      %v1254 = vadd.f32 %v1252, %v1253
      %v1255 = vrot.slane %v1254, 1
      %v1256 = vadd.f32 %v1254, %v1255
      %v1257 = vmul.f32 %v1250, %v332
      %v1258 = vmul.f32 %v1256, %v332
      %v1259 = vadd.f32 %v1257, 1e-05
      %v1260 = vadd.f32 %v1258, 1e-05
      %v1261 = vrsqrt.pop %v1259
      %v1262 = vrsqrt.pop %v1260
      %v1263 = vmul.f32 %v1241, %v1261
      %v1264 = vmul.f32 %v1242, %v1262
      %1265 = vset.pattern.permute.xlu0 15
      %1266 = vperm.xlu0 %1265, %v313
      %v1267 = vpop.permute.xlu0 %1266
      %v1269 = vmul.f32 %v1263, %v1267
      %v1270 = vmul.f32 %v1264, %v1267
      %1271 = vset.pattern.permute.xlu0 16
      %1272 = vperm.xlu0 %1271, %v313
      %v1273 = vpop.permute.xlu0 %1272
      %v1275 = vadd.f32 %v1269, %v1273
      %v1276 = vadd.f32 %v1270, %v1273
      %v1277 = vpack.c.bf16 %v1275, %v1275
      %v1278 = vpack.c.bf16 %v1276, %v1276
      %1279 = vset.pattern.permute.xlu0 26
      %1280 = vperm.xlu0 %1279, %v313
      %v1281 = vpop.permute.xlu0 %1280
      %1283 = vset.pattern.permute.xlu0 26
      %1284 = vperm.xlu0 %1283, %v314
      %v1285 = vpop.permute.xlu0 %1284
      %1287 = vrot.lane.b32.xlu0 %v430, 104
      %v1288 = vpop.permute.xlu0 %1287
      %v1290 = vsel %vm1083, %v1288, 0
      %v1293 = vsel %vm1177, %v1277, 0
      %v1296 = vsel %vm1177, %v1278, 0
      %1298 = vmatprep.subr.bf16.mxu0 %v1296
      %1299 = vmatpush1.bf16.msra.mxu0 %v1293
      %1300 = vmatprep.subr.bf16.mxu0 0
      %1301 = vmatpush1.bf16.msra.mxu0 0
      %1302 = vmatprep.subr.bf16.mxu0 0
      %1303 = vmatpush1.bf16.msra.mxu0 0
      %1304 = vmatprep.subr.bf16.mxu0 0
      %1305 = vmatpush1.bf16.msra.mxu0 0
      %1306 = vmatprep.subr.bf16.mxu0 0
      %1307 = vmatpush1.bf16.msra.mxu0 0
      %1308 = vmatprep.subr.bf16.mxu0 0
      %1309 = vmatpush1.bf16.msra.mxu0 0
      %1310 = vmatprep.subr.bf16.mxu0 0
      %1311 = vmatpush1.bf16.msra.mxu0 0
      %1312 = vmatprep.subr.bf16.mxu0 0
      %1313 = vmatpush1.bf16.msra.mxu0 0
      %1314 = vmatprep.subr.bf16.mxu0 0
      %1315 = vmatpush1.bf16.msra.mxu0 0
      %1316 = vmatprep.subr.bf16.mxu0 0
      %1317 = vmatpush1.bf16.msra.mxu0 0
      %1318 = vmatprep.subr.bf16.mxu0 0
      %1319 = vmatpush1.bf16.msra.mxu0 0
      %1320 = vmatprep.subr.bf16.mxu0 0
      %1321 = vmatpush1.bf16.msra.mxu0 0
      %1322 = vmatprep.subr.bf16.mxu0 0
      %1323 = vmatpush1.bf16.msra.mxu0 0
      %1324 = vmatprep.subr.bf16.mxu0 0
      %1325 = vmatpush1.bf16.msra.mxu0 0
      %1326 = vmatprep.subr.bf16.mxu0 0
      %1327 = vmatpush1.bf16.msra.mxu0 0
      %1328 = vmatprep.subr.bf16.mxu0 0
      %1329 = vmatpush1.bf16.msra.mxu0 0
      %1330 = vmatprep.mubr.bf16.mxu0 0
      %1331 = vmatmul.mubr.bf16.gmra.mrb[0].mxu0 %v1290
      %v1332 = vpop.f32.mrb[0].mxu0
      %v1333 = vadd.f32 %v1281, %v1332
      %v1334 = vpop.f32.mrb[0].mxu0
      %v1335 = vadd.f32 %v1281, %v1334
      %v1336 = vpop.f32.mrb[0].mxu0
      %v1337 = vadd.f32 %v1285, %v1336
      %v1338 = vpop.f32.mrb[0].mxu0
      %v1339 = vadd.f32 %v1285, %v1338
      %1340 = vdwg.mxu0
      %v1341 = vmul.f32 %v1333, 0.5
      %v1342 = vmul.f32 %v1335, 0.5
      %v1343 = vmul.f32 %v1337, 0.5
      %v1344 = vmul.f32 %v1339, 0.5
      %v1345 = vmul.f32 %v1333, 0.70710677
      %v1346 = vmul.f32 %v1335, 0.70710677
      %v1347 = vmul.f32 %v1337, 0.70710677
      %v1348 = vmul.f32 %v1339, 0.70710677
      %vm1349 = vcmp.ge.f32.partialorder %v1345, 0.0
      %vm1350 = vcmp.ge.f32.partialorder %v1346, 0.0
      %vm1351 = vcmp.ge.f32.partialorder %v1347, 0.0
      %vm1352 = vcmp.ge.f32.partialorder %v1348, 0.0
      %v1353 = vsel %vm1349, 1.0, -1.0
      %v1354 = vsel %vm1350, 1.0, -1.0
      %v1355 = vsel %vm1351, 1.0, -1.0
      %v1356 = vsel %vm1352, 1.0, -1.0
      %v1357 = vand.u32 2147483647, %v1345
      %v1358 = vand.u32 2147483647, %v1346
      %v1359 = vand.u32 2147483647, %v1347
      %v1360 = vand.u32 2147483647, %v1348
      %v1361 = vmul.f32 %v1357, 0.3275911
      %v1362 = vmul.f32 %v1358, 0.3275911
      %v1363 = vmul.f32 %v1359, 0.3275911
      %v1364 = vmul.f32 %v1360, 0.3275911
      %v1365 = vadd.f32 %v1361, 1.0
      %v1366 = vadd.f32 %v1362, 1.0
      %v1367 = vadd.f32 %v1363, 1.0
      %v1368 = vadd.f32 %v1364, 1.0
      %v1369 = vrcp.pop %v1365
      %v1370 = vmul.f32 1.0, %v1369
      %v1371 = vrcp.pop %v1366
      %v1372 = vmul.f32 1.0, %v1371
      %v1373 = vrcp.pop %v1367
      %v1374 = vmul.f32 1.0, %v1373
      %v1375 = vrcp.pop %v1368
      %v1376 = vmul.f32 1.0, %v1375
      %v1377 = vmul.f32 %v1370, 1.0614054
      %v1378 = vmul.f32 %v1372, 1.0614054
      %v1379 = vmul.f32 %v1374, 1.0614054
      %v1380 = vmul.f32 %v1376, 1.0614054
      %v1381 = vadd.f32 %v1377, -1.4531521
      %v1382 = vadd.f32 %v1378, -1.4531521
      %v1383 = vadd.f32 %v1379, -1.4531521
      %v1384 = vadd.f32 %v1380, -1.4531521
      %v1385 = vmul.f32 %v1381, %v1370
      %v1386 = vmul.f32 %v1382, %v1372
      %v1387 = vmul.f32 %v1383, %v1374
      %v1388 = vmul.f32 %v1384, %v1376
      %v1389 = vadd.f32 %v1385, 1.4214138
      %v1390 = vadd.f32 %v1386, 1.4214138
      %v1391 = vadd.f32 %v1387, 1.4214138
      %v1392 = vadd.f32 %v1388, 1.4214138
      %v1393 = vmul.f32 %v1389, %v1370
      %v1394 = vmul.f32 %v1390, %v1372
      %v1395 = vmul.f32 %v1391, %v1374
      %v1396 = vmul.f32 %v1392, %v1376
      %v1397 = vadd.f32 %v1393, -0.28449672
      %v1398 = vadd.f32 %v1394, -0.28449672
      %v1399 = vadd.f32 %v1395, -0.28449672
      %v1400 = vadd.f32 %v1396, -0.28449672
      %v1401 = vmul.f32 %v1397, %v1370
      %v1402 = vmul.f32 %v1398, %v1372
      %v1403 = vmul.f32 %v1399, %v1374
      %v1404 = vmul.f32 %v1400, %v1376
      %v1405 = vadd.f32 %v1401, 0.2548296
      %v1406 = vadd.f32 %v1402, 0.2548296
      %v1407 = vadd.f32 %v1403, 0.2548296
      %v1408 = vadd.f32 %v1404, 0.2548296
      %v1409 = vmul.f32 %v1405, %v1370
      %v1410 = vmul.f32 %v1406, %v1372
      %v1411 = vmul.f32 %v1407, %v1374
      %v1412 = vmul.f32 %v1408, %v1376
      %v1413 = vsub.f32 0.0, %v1357
      %v1414 = vsub.f32 0.0, %v1358
      %v1415 = vsub.f32 0.0, %v1359
      %v1416 = vsub.f32 0.0, %v1360
      %v1417 = vmul.f32 %v1413, %v1357
      %v1418 = vmul.f32 %v1414, %v1358
      %v1419 = vmul.f32 %v1415, %v1359
      %v1420 = vmul.f32 %v1416, %v1360
      %v1421 = vmul.f32 %v1417, 1.442695
      %v1422 = vpow.pop %v1421
      %v1423 = vmul.f32 %v1418, 1.442695
      %v1424 = vpow.pop %v1423
      %v1425 = vmul.f32 %v1419, 1.442695
      %v1426 = vpow.pop %v1425
      %v1427 = vmul.f32 %v1420, 1.442695
      %v1428 = vpow.pop %v1427
      %v1429 = vmul.f32 %v1409, %v1422
      %v1430 = vmul.f32 %v1410, %v1424
      %v1431 = vmul.f32 %v1411, %v1426
      %v1432 = vmul.f32 %v1412, %v1428
      %v1433 = vsub.f32 1.0, %v1429
      %v1434 = vsub.f32 1.0, %v1430
      %v1435 = vsub.f32 1.0, %v1431
      %v1436 = vsub.f32 1.0, %v1432
      %v1437 = vmul.f32 %v1353, %v1433
      %v1438 = vmul.f32 %v1354, %v1434
      %v1439 = vmul.f32 %v1355, %v1435
      %v1440 = vmul.f32 %v1356, %v1436
      %v1441 = vadd.f32 %v1437, 1.0
      %v1442 = vadd.f32 %v1438, 1.0
      %v1443 = vadd.f32 %v1439, 1.0
      %v1444 = vadd.f32 %v1440, 1.0
      %v1445 = vmul.f32 %v1341, %v1441
      %v1446 = vmul.f32 %v1342, %v1442
      %v1447 = vmul.f32 %v1343, %v1443
      %v1448 = vmul.f32 %v1344, %v1444
      %v1449 = vpack.c.bf16 %v1447, %v1445
      %v1450 = vpack.c.bf16 %v1448, %v1446
      %1451 = vset.pattern.permute.xlu0 17
      %1452 = vperm.xlu0 %1451, %v313
      %v1453 = vpop.permute.xlu0 %1452
      %1455 = vrot.lane.b32.xlu0 %v1171, 96
      %v1456 = vpop.permute.xlu0 %1455
      %v1458 = vsel %vm432, %v1456, 0
      %1460 = vmatprep.subr.bf16.mxu0 %v1450
      %1461 = vmatpush1.bf16.msra.mxu0 %v1449
      %1462 = vmatprep.subr.bf16.mxu0 0
      %1463 = vmatpush1.bf16.msra.mxu0 0
      %1464 = vmatprep.subr.bf16.mxu0 0
      %1465 = vmatpush1.bf16.msra.mxu0 0
      %1466 = vmatprep.subr.bf16.mxu0 0
      %1467 = vmatpush1.bf16.msra.mxu0 0
      %1468 = vmatprep.subr.bf16.mxu0 0
      %1469 = vmatpush1.bf16.msra.mxu0 0
      %1470 = vmatprep.subr.bf16.mxu0 0
      %1471 = vmatpush1.bf16.msra.mxu0 0
      %1472 = vmatprep.subr.bf16.mxu0 0
      %1473 = vmatpush1.bf16.msra.mxu0 0
      %1474 = vmatprep.subr.bf16.mxu0 0
      %1475 = vmatpush1.bf16.msra.mxu0 0
      %1476 = vmatprep.subr.bf16.mxu0 0
      %1477 = vmatpush1.bf16.msra.mxu0 0
      %1478 = vmatprep.subr.bf16.mxu0 0
      %1479 = vmatpush1.bf16.msra.mxu0 0
      %1480 = vmatprep.subr.bf16.mxu0 0
      %1481 = vmatpush1.bf16.msra.mxu0 0
      %1482 = vmatprep.subr.bf16.mxu0 0
      %1483 = vmatpush1.bf16.msra.mxu0 0
      %1484 = vmatprep.subr.bf16.mxu0 0
      %1485 = vmatpush1.bf16.msra.mxu0 0
      %1486 = vmatprep.subr.bf16.mxu0 0
      %1487 = vmatpush1.bf16.msra.mxu0 0
      %1488 = vmatprep.subr.bf16.mxu0 0
      %1489 = vmatpush1.bf16.msra.mxu0 0
      %1490 = vmatprep.subr.bf16.mxu0 0
      %1491 = vmatpush1.bf16.msra.mxu0 0
      %1492 = vmatprep.mubr.bf16.mxu0 0
      %1493 = vmatmul.mubr.bf16.gmra.mrb[0].mxu0 %v1458
      %v1494 = vpop.f32.mrb[0].mxu0
      %v1495 = vadd.f32 %v1453, %v1494
      %v1496 = vpop.f32.mrb[0].mxu0
      %v1497 = vadd.f32 %v1453, %v1496
      %v1498 = vpop.f32.mrb[0].mxu0
      %v1499 = vpop.f32.mrb[0].mxu0
      %1500 = vdwg.mxu0
      %v1501 = vadd.f32 %v1225, %v1495
      %v1502 = vadd.f32 %v1226, %v1497
      %1503 = vst [vmem:[#allocation2] sm:$0xff] %v1501
      %1504 = vst [vmem:[#allocation2 + $0x8] sm:$0xff] %v1502
      %1505 = vst [vmem:[%s296] sm:$0xff] %v1501
      %1506 = vst [vmem:[%s296 + $0x8] sm:$0xff] %v1502
      %p1507 = scmp.lt.s32.totalorder %s20, 1
      %s1508 = scalar_select %p1507, %s20, 1
      %s1509 = smul.addr %s1508, 2
      %s1510 = smul.addr %s1509, 8
      %s1511 = scalar_lea.vmem %s5, %s1510
      // Predicated region
      $region45: #{multilayer_dcab.1} parent=39 // pred_check
        %p1512 = pneg %p171
      $region46: #{multilayer_dcab.1} parent=39 // pred_check_branch
        %1514 = sbr.rel (%p1512) target = $region48
      $region47: #{multilayer_dcab.1} parent=39 // pred_region
        _
      $region48: #{multilayer_dcab.1} parent=39 // pred_fallthru
        _
    $region40: #{multilayer_dcab.1} parent=5 // pred_fallthru
      _
    %p1515 = scmp.le.s32.totalorder 2, %s11
    // Predicated region
    $region49: #{multilayer_dcab.1} parent=5 // pred_check
      %p1516 = pneg %p1515
    $region50: #{multilayer_dcab.1} parent=5 // pred_check_branch
      %1518 = sbr.rel (%p1516) target = $region52
    $region51: #{multilayer_dcab.1} parent=5 // pred_region
      %s1519 = ssub.s32 %s11, 2
      // Predicated region
      $region53: #{multilayer_dcab.1} parent=51 // pred_check
        %p1520 = pneg %p177
      $region54: #{multilayer_dcab.1} parent=51 // pred_check_branch
        %1522 = sbr.rel (%p1520) target = $region56
      $region55: #{multilayer_dcab.1} parent=51 // pred_region
        %p1523 = scmp.lt.s32.totalorder %s22, 1
        %s1524 = scalar_select %p1523, %s22, 1
        %s1525 = smul.addr %s1524, 2
        %s1526 = smul.addr %s1525, 8
        %s1527 = scalar_lea.vmem %s5, %s1526
      $region56: #{multilayer_dcab.1} parent=51 // pred_fallthru
        _
    $region52: #{multilayer_dcab.1} parent=5 // pred_fallthru
      _
  $region6: #{multilayer_dcab.1} parent=0 // loop_footer
    %s15 = sadd.s32 1, %s11
  $region7: #{multilayer_dcab.1} parent=0 // loop_footer_branch
    %10 = sbr.rel target = $region3
  $region8: #{multilayer_dcab.1} parent=0 // loop_exit
    _

</llo_original>
